<compile_context>
chip_gen: v7x
topology: tpu7x:2x2x1
jax: 0.10.0
libtpu: 0.0.40
codegen_flags: <defaults>
</compile_context>

<pallas_src>
import functools
import math

import jax
import jax.numpy as jnp
from jax.experimental import pallas as pl
from jax.experimental.pallas import tpu as pltpu


def _mha_kernel(x_ref, wqkv_ref, wp_ref, bp_ref, o_ref, ho_ref, *,
                n_head, head_size, seq_len, n_embd, batch):
    """Single grid step: fused QKV for all batches, per-(batch, head) attention,
    one fused output projection."""
    H, HS, T, C, B = n_head, head_size, seq_len, n_embd, batch

    # Fused QKV projection for all batches / heads / Q,K,V at once.
    # x: (B*T, C) bf16; wqkv: (C, 3*H*HS) bf16 with the 1/sqrt(HS) scale folded into Q cols.
    qkv = jnp.dot(x_ref[...], wqkv_ref[...],
                  preferred_element_type=jnp.float32)            # (B*T, 3*H*HS) f32

    # Causal mask, hoisted out of the loops.
    row = jax.lax.broadcasted_iota(jnp.int32, (T, T), 0)
    col = jax.lax.broadcasted_iota(jnp.int32, (T, T), 1)
    causal = row >= col                                          # (T, T) bool

    # B and H are tiny & static -> unrolled. (For real sizes: lax.fori_loop / grid axes.)
    for b in range(B):
        qkv_b = qkv[b * T:(b + 1) * T]                           # (T, 3*H*HS)
        for h in range(H):
            q = qkv_b[:, h * HS:(h + 1) * HS]                    # already scaled
            k = qkv_b[:, (H + h) * HS:(H + h + 1) * HS]
            v = qkv_b[:, (2 * H + h) * HS:(2 * H + h + 1) * HS]

            s = jnp.dot(q.astype(jnp.bfloat16), k.astype(jnp.bfloat16).T,
                        preferred_element_type=jnp.float32)      # (T, T) f32
            s = jnp.where(causal, s, -jnp.inf)

            # Numerically stable softmax in f32; reciprocal on the EUP slot.
            m = jnp.max(s, axis=-1, keepdims=True)
            e = jnp.exp(s - m)
            p = e * pl.reciprocal(jnp.sum(e, axis=-1, keepdims=True), approx=True)

            ho = jnp.dot(p.astype(jnp.bfloat16), v.astype(jnp.bfloat16),
                         preferred_element_type=jnp.float32)     # (T, HS) f32
            # Write into this head's column slice of the head-output scratch.
            ho_ref[b * T:(b + 1) * T, h * HS:(h + 1) * HS] = ho

    # ONE output projection for all batches and heads: (B*T, H*HS) @ (H*HS, C).
    y = jnp.dot(ho_ref[...].astype(jnp.bfloat16), wp_ref[...],
                preferred_element_type=jnp.float32)              # (B*T, C) f32
    y = y + bp_ref[...]                                          # + (1, C) broadcast
    o_ref[...] = y.astype(o_ref.dtype)


def multi_head_attention(x, wq, wk, wv, wp, bp):
    """x: (B, T, C); wq/wk/wv: (H, C, HS); wp: (H*HS, C); bp: (C,). Returns (B, T, C)."""
    B, T, C = x.shape
    H, _, HS = wq.shape
    out_dtype = x.dtype

    # Fold the attention scale into the Q weights (one-time weight transform, exact).
    scale = HS ** (-0.5)
    wq_scaled = wq * scale

    # Fuse per-head QKV weights into one (C, 3*H*HS) matrix: [Q | K | V], head-major blocks.
    # bf16 weights -> bf16 MXU feeds + half the HBM->VMEM bytes.
    w_qkv = jnp.concatenate(
        [jnp.transpose(w, (1, 0, 2)).reshape(C, H * HS) for w in (wq_scaled, wk, wv)],
        axis=-1).astype(jnp.bfloat16)                            # (C, 3*H*HS)
    wp_bf = wp.astype(jnp.bfloat16)                              # (H*HS, C)
    bp2 = bp.reshape(1, C).astype(jnp.float32)

    # Batch folded into M: x as a single (B*T, C) slab, one grid step.
    x_flat = x.reshape(B * T, C).astype(jnp.bfloat16)

    kernel = functools.partial(_mha_kernel, n_head=H, head_size=HS,
                               seq_len=T, n_embd=C, batch=B)

    out_flat = pl.pallas_call(
        kernel,
        out_shape=jax.ShapeDtypeStruct((B * T, C), out_dtype),
        grid_spec=pltpu.PrefetchScalarGridSpec(
            num_scalar_prefetch=0,
            grid=(1,),  # single step: per-step pipeline overhead paid once
            in_specs=[
                pl.BlockSpec((B * T, C), lambda i: (0, 0)),          # x (batch folded)
                pl.BlockSpec((C, 3 * H * HS), lambda i: (0, 0)),     # fused QKV weights
                pl.BlockSpec((H * HS, C), lambda i: (0, 0)),         # output projection
                pl.BlockSpec((1, C), lambda i: (0, 0)),              # projection bias
            ],
            out_specs=pl.BlockSpec((B * T, C), lambda i: (0, 0)),
            scratch_shapes=[pltpu.VMEM((B * T, H * HS), jnp.float32)],  # head outputs
        ),
        # Single step -> semantics irrelevant here. For real sizes, split batch/q-tiles
        # on a leading grid axis (multiple of 2 on v7x) and mark it core-parallel.
        compiler_params=pltpu.CompilerParams(
            dimension_semantics=("arbitrary",)),
    )(x_flat, w_qkv, wp_bf, bp2)

    return out_flat.reshape(B, T, C)


def _reference(x, wq, wk, wv, wp, bp):
    """Pure-JAX f32 reference matching the PyTorch forward (eval mode)."""
    B, T, C = x.shape
    H, _, HS = wq.shape
    row = jnp.arange(T)[:, None]
    col = jnp.arange(T)[None, :]
    causal = row >= col
    outs = []
    for h in range(H):
        q = x @ wq[h]
        k = x @ wk[h]
        v = x @ wv[h]
        wei = (q @ jnp.swapaxes(k, -2, -1)) * HS ** (-0.5)
        wei = jnp.where(causal, wei, -jnp.inf)
        wei = jax.nn.softmax(wei, axis=-1)
        outs.append(wei @ v)
    concat = jnp.concatenate(outs, axis=-1)
    return concat @ wp + bp


if __name__ == "__main__":
    # Small shapes consistent with the module.
    B, T = 2, 8               # batch, sequence length (block_size = T)
    n_embd = 32
    n_head = 4
    head_size = 8             # head_size * n_head == n_embd
    dropout = 0.1             # eval mode -> identity

    key = jax.random.PRNGKey(0)
    kx, kq, kk, kv, kp, kb = jax.random.split(key, 6)

    x = jax.random.normal(kx, (B, T, n_embd), dtype=jnp.float32)

    # nn.Linear default init ~ U(-1/sqrt(fan_in), 1/sqrt(fan_in)); deterministic synthetic weights.
    bound_qkv = 1.0 / math.sqrt(n_embd)
    wq = jax.random.uniform(kq, (n_head, n_embd, head_size), jnp.float32, -bound_qkv, bound_qkv)
    wk = jax.random.uniform(kk, (n_head, n_embd, head_size), jnp.float32, -bound_qkv, bound_qkv)
    wv = jax.random.uniform(kv, (n_head, n_embd, head_size), jnp.float32, -bound_qkv, bound_qkv)

    bound_p = 1.0 / math.sqrt(n_head * head_size)
    wp = jax.random.uniform(kp, (n_head * head_size, n_embd), jnp.float32, -bound_p, bound_p)
    bp = jax.random.uniform(kb, (n_embd,), jnp.float32, -bound_p, bound_p)

    out = multi_head_attention(x, wq, wk, wv, wp, bp)
    out = jax.block_until_ready(out)

    ref = _reference(x, wq, wk, wv, wp, bp)
    assert out.shape == (B, T, n_embd)
    # Tolerance reflects bf16 MXU operands (f32 accumulate) + EUP approximate reciprocal;
    # observed error is ~1e-2 absolute worst case at these magnitudes.
    assert jnp.allclose(out, ref, atol=3e-2, rtol=3e-2), "mismatch vs reference"

    print("KERNEL_OK")
</pallas_src>

<mosaic_0001>
module attributes {stable_mosaic.version = 11 : i64} {
  func.func @_mha_kernel(%arg0: i32, %arg1: memref<16x32xbf16, #tpu.memory_space<vmem>>, %arg2: memref<32x96xbf16, #tpu.memory_space<vmem>>, %arg3: memref<32x32xbf16, #tpu.memory_space<vmem>>, %arg4: memref<1x32xf32, #tpu.memory_space<vmem>>, %arg5: memref<16x32xf32, #tpu.memory_space<vmem>>, %arg6: memref<16x32xf32, #tpu.memory_space<vmem>>) attributes {dimension_semantics = [#tpu.dimension_semantics<arbitrary>], iteration_bounds = array<i64: 1>, scalar_prefetch = 0 : i64, scratch_operands = 1 : i64, tpu.core_type = #tpu.core_type<tc>, window_params = [{pipeline_mode = #tpu.pipeline_mode<synchronous>, transform_indices = @transform_0, window_bounds = array<i64: 16, 32>}, {pipeline_mode = #tpu.pipeline_mode<synchronous>, transform_indices = @transform_1, window_bounds = array<i64: 32, 96>}, {pipeline_mode = #tpu.pipeline_mode<synchronous>, transform_indices = @transform_2, window_bounds = array<i64: 32, 32>}, {pipeline_mode = #tpu.pipeline_mode<synchronous>, transform_indices = @transform_3, window_bounds = array<i64: 1, 32>}, {pipeline_mode = #tpu.pipeline_mode<synchronous>, transform_indices = @transform_4, window_bounds = array<i64: 16, 32>}]} {
    %c0 = arith.constant 0 : index
    %c0_0 = arith.constant 0 : index
    %0 = vector.load %arg1[%c0, %c0_0] : memref<16x32xbf16, #tpu.memory_space<vmem>>, vector<16x32xbf16>
    %c0_1 = arith.constant 0 : index
    %c0_2 = arith.constant 0 : index
    %1 = vector.load %arg2[%c0_1, %c0_2] : memref<32x96xbf16, #tpu.memory_space<vmem>>, vector<32x96xbf16>
    %cst = arith.constant dense<0.000000e+00> : vector<16x96xf32>
    %2 = tpu.matmul %0, %1, %cst {dimension_numbers = #tpu.dot_dimension_numbers<[1], [0], [0], [1], [0, 0, 1, 1], [], []>} : vector<16x32xbf16>, vector<32x96xbf16>, vector<16x96xf32> -> vector<16x96xf32>
    %3 = tpu.iota {dimensions = array<i32: 0>} : vector<8x8xi32>
    %4 = tpu.iota {dimensions = array<i32: 1>} : vector<8x8xi32>
    %5 = arith.cmpi sge, %3, %4 : vector<8x8xi32>
    %6 = vector.extract_strided_slice %2 {offsets = [0, 0], sizes = [8, 96], strides = [1, 1]} : vector<16x96xf32> to vector<8x96xf32>
    %7 = vector.extract_strided_slice %6 {offsets = [0, 0], sizes = [8, 8], strides = [1, 1]} : vector<8x96xf32> to vector<8x8xf32>
    %8 = vector.extract_strided_slice %6 {offsets = [0, 32], sizes = [8, 8], strides = [1, 1]} : vector<8x96xf32> to vector<8x8xf32>
    %9 = vector.extract_strided_slice %6 {offsets = [0, 64], sizes = [8, 8], strides = [1, 1]} : vector<8x96xf32> to vector<8x8xf32>
    %10 = arith.truncf %7 : vector<8x8xf32> to vector<8x8xbf16>
    %11 = arith.truncf %8 : vector<8x8xf32> to vector<8x8xbf16>
    %12 = tpu.transpose %11, [1, 0] : vector<8x8xbf16> -> vector<8x8xbf16>
    %cst_3 = arith.constant dense<0.000000e+00> : vector<8x8xf32>
    %13 = tpu.matmul %10, %12, %cst_3 {dimension_numbers = #tpu.dot_dimension_numbers<[1], [0], [0], [1], [0, 0, 1, 1], [], []>} : vector<8x8xbf16>, vector<8x8xbf16>, vector<8x8xf32> -> vector<8x8xf32>
    %cst_4 = arith.constant 0xFF800000 : f32
    %14 = vector.broadcast %cst_4 : f32 to vector<8x8xf32>
    %15 = arith.select %5, %13, %14 : vector<8x8xi1>, vector<8x8xf32>
    %cst_5 = arith.constant dense<0xFF800000> : vector<8xf32>
    %16 = vector.multi_reduction <maximumf>, %15, %cst_5 [1] : vector<8x8xf32> to vector<8xf32>
    %17 = vector.shape_cast %16 : vector<8xf32> to vector<8x1xf32>
    %18 = vector.broadcast %17 : vector<8x1xf32> to vector<8x8xf32>
    %19 = arith.subf %15, %18 : vector<8x8xf32>
    %20 = math.exp %19 : vector<8x8xf32>
    %cst_6 = arith.constant dense<0.000000e+00> : vector<8xf32>
    %21 = vector.multi_reduction <add>, %20, %cst_6 [1] : vector<8x8xf32> to vector<8xf32>
    %22 = vector.shape_cast %21 : vector<8xf32> to vector<8x1xf32>
    %23 = tpu.reciprocal %22 {approx = true} : vector<8x1xf32> -> vector<8x1xf32>
    %24 = vector.broadcast %23 : vector<8x1xf32> to vector<8x8xf32>
    %25 = arith.mulf %20, %24 : vector<8x8xf32>
    %26 = arith.truncf %25 : vector<8x8xf32> to vector<8x8xbf16>
    %27 = arith.truncf %9 : vector<8x8xf32> to vector<8x8xbf16>
    %cst_7 = arith.constant dense<0.000000e+00> : vector<8x8xf32>
    %28 = tpu.matmul %26, %27, %cst_7 {dimension_numbers = #tpu.dot_dimension_numbers<[1], [0], [0], [1], [0, 0, 1, 1], [], []>} : vector<8x8xbf16>, vector<8x8xbf16>, vector<8x8xf32> -> vector<8x8xf32>
    %c0_8 = arith.constant 0 : index
    %c0_9 = arith.constant 0 : index
    %29 = vector.load %arg6[%c0_8, %c0_9] : memref<16x32xf32, #tpu.memory_space<vmem>>, vector<8x8xf32>
    tpu.vector_store %arg6[%c0_8, %c0_9], %28 {strides = array<i32>} : memref<16x32xf32, #tpu.memory_space<vmem>>, vector<8x8xf32>,
    %30 = vector.extract_strided_slice %6 {offsets = [0, 8], sizes = [8, 8], strides = [1, 1]} : vector<8x96xf32> to vector<8x8xf32>
    %31 = vector.extract_strided_slice %6 {offsets = [0, 40], sizes = [8, 8], strides = [1, 1]} : vector<8x96xf32> to vector<8x8xf32>
    %32 = vector.extract_strided_slice %6 {offsets = [0, 72], sizes = [8, 8], strides = [1, 1]} : vector<8x96xf32> to vector<8x8xf32>
    %33 = arith.truncf %30 : vector<8x8xf32> to vector<8x8xbf16>
    %34 = arith.truncf %31 : vector<8x8xf32> to vector<8x8xbf16>
    %35 = tpu.transpose %34, [1, 0] : vector<8x8xbf16> -> vector<8x8xbf16>
    %cst_10 = arith.constant dense<0.000000e+00> : vector<8x8xf32>
    %36 = tpu.matmul %33, %35, %cst_10 {dimension_numbers = #tpu.dot_dimension_numbers<[1], [0], [0], [1], [0, 0, 1, 1], [], []>} : vector<8x8xbf16>, vector<8x8xbf16>, vector<8x8xf32> -> vector<8x8xf32>
    %cst_11 = arith.constant 0xFF800000 : f32
    %37 = vector.broadcast %cst_11 : f32 to vector<8x8xf32>
    %38 = arith.select %5, %36, %37 : vector<8x8xi1>, vector<8x8xf32>
    %cst_12 = arith.constant dense<0xFF800000> : vector<8xf32>
    %39 = vector.multi_reduction <maximumf>, %38, %cst_12 [1] : vector<8x8xf32> to vector<8xf32>
    %40 = vector.shape_cast %39 : vector<8xf32> to vector<8x1xf32>
    %41 = vector.broadcast %40 : vector<8x1xf32> to vector<8x8xf32>
    %42 = arith.subf %38, %41 : vector<8x8xf32>
    %43 = math.exp %42 : vector<8x8xf32>
    %cst_13 = arith.constant dense<0.000000e+00> : vector<8xf32>
    %44 = vector.multi_reduction <add>, %43, %cst_13 [1] : vector<8x8xf32> to vector<8xf32>
    %45 = vector.shape_cast %44 : vector<8xf32> to vector<8x1xf32>
    %46 = tpu.reciprocal %45 {approx = true} : vector<8x1xf32> -> vector<8x1xf32>
    %47 = vector.broadcast %46 : vector<8x1xf32> to vector<8x8xf32>
    %48 = arith.mulf %43, %47 : vector<8x8xf32>
    %49 = arith.truncf %48 : vector<8x8xf32> to vector<8x8xbf16>
    %50 = arith.truncf %32 : vector<8x8xf32> to vector<8x8xbf16>
    %cst_14 = arith.constant dense<0.000000e+00> : vector<8x8xf32>
    %51 = tpu.matmul %49, %50, %cst_14 {dimension_numbers = #tpu.dot_dimension_numbers<[1], [0], [0], [1], [0, 0, 1, 1], [], []>} : vector<8x8xbf16>, vector<8x8xbf16>, vector<8x8xf32> -> vector<8x8xf32>
    %c0_15 = arith.constant 0 : index
    %c8 = arith.constant 8 : index
    %52 = vector.load %arg6[%c0_15, %c8] : memref<16x32xf32, #tpu.memory_space<vmem>>, vector<8x8xf32>
    tpu.vector_store %arg6[%c0_15, %c8], %51 {strides = array<i32>} : memref<16x32xf32, #tpu.memory_space<vmem>>, vector<8x8xf32>,
    %53 = vector.extract_strided_slice %6 {offsets = [0, 16], sizes = [8, 8], strides = [1, 1]} : vector<8x96xf32> to vector<8x8xf32>
    %54 = vector.extract_strided_slice %6 {offsets = [0, 48], sizes = [8, 8], strides = [1, 1]} : vector<8x96xf32> to vector<8x8xf32>
    %55 = vector.extract_strided_slice %6 {offsets = [0, 80], sizes = [8, 8], strides = [1, 1]} : vector<8x96xf32> to vector<8x8xf32>
    %56 = arith.truncf %53 : vector<8x8xf32> to vector<8x8xbf16>
    %57 = arith.truncf %54 : vector<8x8xf32> to vector<8x8xbf16>
    %58 = tpu.transpose %57, [1, 0] : vector<8x8xbf16> -> vector<8x8xbf16>
    %cst_16 = arith.constant dense<0.000000e+00> : vector<8x8xf32>
    %59 = tpu.matmul %56, %58, %cst_16 {dimension_numbers = #tpu.dot_dimension_numbers<[1], [0], [0], [1], [0, 0, 1, 1], [], []>} : vector<8x8xbf16>, vector<8x8xbf16>, vector<8x8xf32> -> vector<8x8xf32>
    %cst_17 = arith.constant 0xFF800000 : f32
    %60 = vector.broadcast %cst_17 : f32 to vector<8x8xf32>
    %61 = arith.select %5, %59, %60 : vector<8x8xi1>, vector<8x8xf32>
    %cst_18 = arith.constant dense<0xFF800000> : vector<8xf32>
    %62 = vector.multi_reduction <maximumf>, %61, %cst_18 [1] : vector<8x8xf32> to vector<8xf32>
    %63 = vector.shape_cast %62 : vector<8xf32> to vector<8x1xf32>
    %64 = vector.broadcast %63 : vector<8x1xf32> to vector<8x8xf32>
    %65 = arith.subf %61, %64 : vector<8x8xf32>
    %66 = math.exp %65 : vector<8x8xf32>
    %cst_19 = arith.constant dense<0.000000e+00> : vector<8xf32>
    %67 = vector.multi_reduction <add>, %66, %cst_19 [1] : vector<8x8xf32> to vector<8xf32>
    %68 = vector.shape_cast %67 : vector<8xf32> to vector<8x1xf32>
    %69 = tpu.reciprocal %68 {approx = true} : vector<8x1xf32> -> vector<8x1xf32>
    %70 = vector.broadcast %69 : vector<8x1xf32> to vector<8x8xf32>
    %71 = arith.mulf %66, %70 : vector<8x8xf32>
    %72 = arith.truncf %71 : vector<8x8xf32> to vector<8x8xbf16>
    %73 = arith.truncf %55 : vector<8x8xf32> to vector<8x8xbf16>
    %cst_20 = arith.constant dense<0.000000e+00> : vector<8x8xf32>
    %74 = tpu.matmul %72, %73, %cst_20 {dimension_numbers = #tpu.dot_dimension_numbers<[1], [0], [0], [1], [0, 0, 1, 1], [], []>} : vector<8x8xbf16>, vector<8x8xbf16>, vector<8x8xf32> -> vector<8x8xf32>
    %c0_21 = arith.constant 0 : index
    %c16 = arith.constant 16 : index
    %75 = vector.load %arg6[%c0_21, %c16] : memref<16x32xf32, #tpu.memory_space<vmem>>, vector<8x8xf32>
    tpu.vector_store %arg6[%c0_21, %c16], %74 {strides = array<i32>} : memref<16x32xf32, #tpu.memory_space<vmem>>, vector<8x8xf32>,
    %76 = vector.extract_strided_slice %6 {offsets = [0, 24], sizes = [8, 8], strides = [1, 1]} : vector<8x96xf32> to vector<8x8xf32>
    %77 = vector.extract_strided_slice %6 {offsets = [0, 56], sizes = [8, 8], strides = [1, 1]} : vector<8x96xf32> to vector<8x8xf32>
    %78 = vector.extract_strided_slice %6 {offsets = [0, 88], sizes = [8, 8], strides = [1, 1]} : vector<8x96xf32> to vector<8x8xf32>
    %79 = arith.truncf %76 : vector<8x8xf32> to vector<8x8xbf16>
    %80 = arith.truncf %77 : vector<8x8xf32> to vector<8x8xbf16>
    %81 = tpu.transpose %80, [1, 0] : vector<8x8xbf16> -> vector<8x8xbf16>
    %cst_22 = arith.constant dense<0.000000e+00> : vector<8x8xf32>
    %82 = tpu.matmul %79, %81, %cst_22 {dimension_numbers = #tpu.dot_dimension_numbers<[1], [0], [0], [1], [0, 0, 1, 1], [], []>} : vector<8x8xbf16>, vector<8x8xbf16>, vector<8x8xf32> -> vector<8x8xf32>
    %cst_23 = arith.constant 0xFF800000 : f32
    %83 = vector.broadcast %cst_23 : f32 to vector<8x8xf32>
    %84 = arith.select %5, %82, %83 : vector<8x8xi1>, vector<8x8xf32>
    %cst_24 = arith.constant dense<0xFF800000> : vector<8xf32>
    %85 = vector.multi_reduction <maximumf>, %84, %cst_24 [1] : vector<8x8xf32> to vector<8xf32>
    %86 = vector.shape_cast %85 : vector<8xf32> to vector<8x1xf32>
    %87 = vector.broadcast %86 : vector<8x1xf32> to vector<8x8xf32>
    %88 = arith.subf %84, %87 : vector<8x8xf32>
    %89 = math.exp %88 : vector<8x8xf32>
    %cst_25 = arith.constant dense<0.000000e+00> : vector<8xf32>
    %90 = vector.multi_reduction <add>, %89, %cst_25 [1] : vector<8x8xf32> to vector<8xf32>
    %91 = vector.shape_cast %90 : vector<8xf32> to vector<8x1xf32>
    %92 = tpu.reciprocal %91 {approx = true} : vector<8x1xf32> -> vector<8x1xf32>
    %93 = vector.broadcast %92 : vector<8x1xf32> to vector<8x8xf32>
    %94 = arith.mulf %89, %93 : vector<8x8xf32>
    %95 = arith.truncf %94 : vector<8x8xf32> to vector<8x8xbf16>
    %96 = arith.truncf %78 : vector<8x8xf32> to vector<8x8xbf16>
    %cst_26 = arith.constant dense<0.000000e+00> : vector<8x8xf32>
    %97 = tpu.matmul %95, %96, %cst_26 {dimension_numbers = #tpu.dot_dimension_numbers<[1], [0], [0], [1], [0, 0, 1, 1], [], []>} : vector<8x8xbf16>, vector<8x8xbf16>, vector<8x8xf32> -> vector<8x8xf32>
    %c0_27 = arith.constant 0 : index
    %c24 = arith.constant 24 : index
    %98 = vector.load %arg6[%c0_27, %c24] : memref<16x32xf32, #tpu.memory_space<vmem>>, vector<8x8xf32>
    tpu.vector_store %arg6[%c0_27, %c24], %97 {strides = array<i32>} : memref<16x32xf32, #tpu.memory_space<vmem>>, vector<8x8xf32>,
    %99 = vector.extract_strided_slice %2 {offsets = [8, 0], sizes = [8, 96], strides = [1, 1]} : vector<16x96xf32> to vector<8x96xf32>
    %100 = vector.extract_strided_slice %99 {offsets = [0, 0], sizes = [8, 8], strides = [1, 1]} : vector<8x96xf32> to vector<8x8xf32>
    %101 = vector.extract_strided_slice %99 {offsets = [0, 32], sizes = [8, 8], strides = [1, 1]} : vector<8x96xf32> to vector<8x8xf32>
    %102 = vector.extract_strided_slice %99 {offsets = [0, 64], sizes = [8, 8], strides = [1, 1]} : vector<8x96xf32> to vector<8x8xf32>
    %103 = arith.truncf %100 : vector<8x8xf32> to vector<8x8xbf16>
    %104 = arith.truncf %101 : vector<8x8xf32> to vector<8x8xbf16>
    %105 = tpu.transpose %104, [1, 0] : vector<8x8xbf16> -> vector<8x8xbf16>
    %cst_28 = arith.constant dense<0.000000e+00> : vector<8x8xf32>
    %106 = tpu.matmul %103, %105, %cst_28 {dimension_numbers = #tpu.dot_dimension_numbers<[1], [0], [0], [1], [0, 0, 1, 1], [], []>} : vector<8x8xbf16>, vector<8x8xbf16>, vector<8x8xf32> -> vector<8x8xf32>
    %cst_29 = arith.constant 0xFF800000 : f32
    %107 = vector.broadcast %cst_29 : f32 to vector<8x8xf32>
    %108 = arith.select %5, %106, %107 : vector<8x8xi1>, vector<8x8xf32>
    %cst_30 = arith.constant dense<0xFF800000> : vector<8xf32>
    %109 = vector.multi_reduction <maximumf>, %108, %cst_30 [1] : vector<8x8xf32> to vector<8xf32>
    %110 = vector.shape_cast %109 : vector<8xf32> to vector<8x1xf32>
    %111 = vector.broadcast %110 : vector<8x1xf32> to vector<8x8xf32>
    %112 = arith.subf %108, %111 : vector<8x8xf32>
    %113 = math.exp %112 : vector<8x8xf32>
    %cst_31 = arith.constant dense<0.000000e+00> : vector<8xf32>
    %114 = vector.multi_reduction <add>, %113, %cst_31 [1] : vector<8x8xf32> to vector<8xf32>
    %115 = vector.shape_cast %114 : vector<8xf32> to vector<8x1xf32>
    %116 = tpu.reciprocal %115 {approx = true} : vector<8x1xf32> -> vector<8x1xf32>
    %117 = vector.broadcast %116 : vector<8x1xf32> to vector<8x8xf32>
    %118 = arith.mulf %113, %117 : vector<8x8xf32>
    %119 = arith.truncf %118 : vector<8x8xf32> to vector<8x8xbf16>
    %120 = arith.truncf %102 : vector<8x8xf32> to vector<8x8xbf16>
    %cst_32 = arith.constant dense<0.000000e+00> : vector<8x8xf32>
    %121 = tpu.matmul %119, %120, %cst_32 {dimension_numbers = #tpu.dot_dimension_numbers<[1], [0], [0], [1], [0, 0, 1, 1], [], []>} : vector<8x8xbf16>, vector<8x8xbf16>, vector<8x8xf32> -> vector<8x8xf32>
    %c8_33 = arith.constant 8 : index
    %c0_34 = arith.constant 0 : index
    %122 = vector.load %arg6[%c8_33, %c0_34] : memref<16x32xf32, #tpu.memory_space<vmem>>, vector<8x8xf32>
    tpu.vector_store %arg6[%c8_33, %c0_34], %121 {strides = array<i32>} : memref<16x32xf32, #tpu.memory_space<vmem>>, vector<8x8xf32>,
    %123 = vector.extract_strided_slice %99 {offsets = [0, 8], sizes = [8, 8], strides = [1, 1]} : vector<8x96xf32> to vector<8x8xf32>
    %124 = vector.extract_strided_slice %99 {offsets = [0, 40], sizes = [8, 8], strides = [1, 1]} : vector<8x96xf32> to vector<8x8xf32>
    %125 = vector.extract_strided_slice %99 {offsets = [0, 72], sizes = [8, 8], strides = [1, 1]} : vector<8x96xf32> to vector<8x8xf32>
    %126 = arith.truncf %123 : vector<8x8xf32> to vector<8x8xbf16>
    %127 = arith.truncf %124 : vector<8x8xf32> to vector<8x8xbf16>
    %128 = tpu.transpose %127, [1, 0] : vector<8x8xbf16> -> vector<8x8xbf16>
    %cst_35 = arith.constant dense<0.000000e+00> : vector<8x8xf32>
    %129 = tpu.matmul %126, %128, %cst_35 {dimension_numbers = #tpu.dot_dimension_numbers<[1], [0], [0], [1], [0, 0, 1, 1], [], []>} : vector<8x8xbf16>, vector<8x8xbf16>, vector<8x8xf32> -> vector<8x8xf32>
    %cst_36 = arith.constant 0xFF800000 : f32
    %130 = vector.broadcast %cst_36 : f32 to vector<8x8xf32>
    %131 = arith.select %5, %129, %130 : vector<8x8xi1>, vector<8x8xf32>
    %cst_37 = arith.constant dense<0xFF800000> : vector<8xf32>
    %132 = vector.multi_reduction <maximumf>, %131, %cst_37 [1] : vector<8x8xf32> to vector<8xf32>
    %133 = vector.shape_cast %132 : vector<8xf32> to vector<8x1xf32>
    %134 = vector.broadcast %133 : vector<8x1xf32> to vector<8x8xf32>
    %135 = arith.subf %131, %134 : vector<8x8xf32>
    %136 = math.exp %135 : vector<8x8xf32>
    %cst_38 = arith.constant dense<0.000000e+00> : vector<8xf32>
    %137 = vector.multi_reduction <add>, %136, %cst_38 [1] : vector<8x8xf32> to vector<8xf32>
    %138 = vector.shape_cast %137 : vector<8xf32> to vector<8x1xf32>
    %139 = tpu.reciprocal %138 {approx = true} : vector<8x1xf32> -> vector<8x1xf32>
    %140 = vector.broadcast %139 : vector<8x1xf32> to vector<8x8xf32>
    %141 = arith.mulf %136, %140 : vector<8x8xf32>
    %142 = arith.truncf %141 : vector<8x8xf32> to vector<8x8xbf16>
    %143 = arith.truncf %125 : vector<8x8xf32> to vector<8x8xbf16>
    %cst_39 = arith.constant dense<0.000000e+00> : vector<8x8xf32>
    %144 = tpu.matmul %142, %143, %cst_39 {dimension_numbers = #tpu.dot_dimension_numbers<[1], [0], [0], [1], [0, 0, 1, 1], [], []>} : vector<8x8xbf16>, vector<8x8xbf16>, vector<8x8xf32> -> vector<8x8xf32>
    %c8_40 = arith.constant 8 : index
    %c8_41 = arith.constant 8 : index
    %145 = vector.load %arg6[%c8_40, %c8_41] : memref<16x32xf32, #tpu.memory_space<vmem>>, vector<8x8xf32>
    tpu.vector_store %arg6[%c8_40, %c8_41], %144 {strides = array<i32>} : memref<16x32xf32, #tpu.memory_space<vmem>>, vector<8x8xf32>,
    %146 = vector.extract_strided_slice %99 {offsets = [0, 16], sizes = [8, 8], strides = [1, 1]} : vector<8x96xf32> to vector<8x8xf32>
    %147 = vector.extract_strided_slice %99 {offsets = [0, 48], sizes = [8, 8], strides = [1, 1]} : vector<8x96xf32> to vector<8x8xf32>
    %148 = vector.extract_strided_slice %99 {offsets = [0, 80], sizes = [8, 8], strides = [1, 1]} : vector<8x96xf32> to vector<8x8xf32>
    %149 = arith.truncf %146 : vector<8x8xf32> to vector<8x8xbf16>
    %150 = arith.truncf %147 : vector<8x8xf32> to vector<8x8xbf16>
    %151 = tpu.transpose %150, [1, 0] : vector<8x8xbf16> -> vector<8x8xbf16>
    %cst_42 = arith.constant dense<0.000000e+00> : vector<8x8xf32>
    %152 = tpu.matmul %149, %151, %cst_42 {dimension_numbers = #tpu.dot_dimension_numbers<[1], [0], [0], [1], [0, 0, 1, 1], [], []>} : vector<8x8xbf16>, vector<8x8xbf16>, vector<8x8xf32> -> vector<8x8xf32>
    %cst_43 = arith.constant 0xFF800000 : f32
    %153 = vector.broadcast %cst_43 : f32 to vector<8x8xf32>
    %154 = arith.select %5, %152, %153 : vector<8x8xi1>, vector<8x8xf32>
    %cst_44 = arith.constant dense<0xFF800000> : vector<8xf32>
    %155 = vector.multi_reduction <maximumf>, %154, %cst_44 [1] : vector<8x8xf32> to vector<8xf32>
    %156 = vector.shape_cast %155 : vector<8xf32> to vector<8x1xf32>
    %157 = vector.broadcast %156 : vector<8x1xf32> to vector<8x8xf32>
    %158 = arith.subf %154, %157 : vector<8x8xf32>
    %159 = math.exp %158 : vector<8x8xf32>
    %cst_45 = arith.constant dense<0.000000e+00> : vector<8xf32>
    %160 = vector.multi_reduction <add>, %159, %cst_45 [1] : vector<8x8xf32> to vector<8xf32>
    %161 = vector.shape_cast %160 : vector<8xf32> to vector<8x1xf32>
    %162 = tpu.reciprocal %161 {approx = true} : vector<8x1xf32> -> vector<8x1xf32>
    %163 = vector.broadcast %162 : vector<8x1xf32> to vector<8x8xf32>
    %164 = arith.mulf %159, %163 : vector<8x8xf32>
    %165 = arith.truncf %164 : vector<8x8xf32> to vector<8x8xbf16>
    %166 = arith.truncf %148 : vector<8x8xf32> to vector<8x8xbf16>
    %cst_46 = arith.constant dense<0.000000e+00> : vector<8x8xf32>
    %167 = tpu.matmul %165, %166, %cst_46 {dimension_numbers = #tpu.dot_dimension_numbers<[1], [0], [0], [1], [0, 0, 1, 1], [], []>} : vector<8x8xbf16>, vector<8x8xbf16>, vector<8x8xf32> -> vector<8x8xf32>
    %c8_47 = arith.constant 8 : index
    %c16_48 = arith.constant 16 : index
    %168 = vector.load %arg6[%c8_47, %c16_48] : memref<16x32xf32, #tpu.memory_space<vmem>>, vector<8x8xf32>
    tpu.vector_store %arg6[%c8_47, %c16_48], %167 {strides = array<i32>} : memref<16x32xf32, #tpu.memory_space<vmem>>, vector<8x8xf32>,
    %169 = vector.extract_strided_slice %99 {offsets = [0, 24], sizes = [8, 8], strides = [1, 1]} : vector<8x96xf32> to vector<8x8xf32>
    %170 = vector.extract_strided_slice %99 {offsets = [0, 56], sizes = [8, 8], strides = [1, 1]} : vector<8x96xf32> to vector<8x8xf32>
    %171 = vector.extract_strided_slice %99 {offsets = [0, 88], sizes = [8, 8], strides = [1, 1]} : vector<8x96xf32> to vector<8x8xf32>
    %172 = arith.truncf %169 : vector<8x8xf32> to vector<8x8xbf16>
    %173 = arith.truncf %170 : vector<8x8xf32> to vector<8x8xbf16>
    %174 = tpu.transpose %173, [1, 0] : vector<8x8xbf16> -> vector<8x8xbf16>
    %cst_49 = arith.constant dense<0.000000e+00> : vector<8x8xf32>
    %175 = tpu.matmul %172, %174, %cst_49 {dimension_numbers = #tpu.dot_dimension_numbers<[1], [0], [0], [1], [0, 0, 1, 1], [], []>} : vector<8x8xbf16>, vector<8x8xbf16>, vector<8x8xf32> -> vector<8x8xf32>
    %cst_50 = arith.constant 0xFF800000 : f32
    %176 = vector.broadcast %cst_50 : f32 to vector<8x8xf32>
    %177 = arith.select %5, %175, %176 : vector<8x8xi1>, vector<8x8xf32>
    %cst_51 = arith.constant dense<0xFF800000> : vector<8xf32>
    %178 = vector.multi_reduction <maximumf>, %177, %cst_51 [1] : vector<8x8xf32> to vector<8xf32>
    %179 = vector.shape_cast %178 : vector<8xf32> to vector<8x1xf32>
    %180 = vector.broadcast %179 : vector<8x1xf32> to vector<8x8xf32>
    %181 = arith.subf %177, %180 : vector<8x8xf32>
    %182 = math.exp %181 : vector<8x8xf32>
    %cst_52 = arith.constant dense<0.000000e+00> : vector<8xf32>
    %183 = vector.multi_reduction <add>, %182, %cst_52 [1] : vector<8x8xf32> to vector<8xf32>
    %184 = vector.shape_cast %183 : vector<8xf32> to vector<8x1xf32>
    %185 = tpu.reciprocal %184 {approx = true} : vector<8x1xf32> -> vector<8x1xf32>
    %186 = vector.broadcast %185 : vector<8x1xf32> to vector<8x8xf32>
    %187 = arith.mulf %182, %186 : vector<8x8xf32>
    %188 = arith.truncf %187 : vector<8x8xf32> to vector<8x8xbf16>
    %189 = arith.truncf %171 : vector<8x8xf32> to vector<8x8xbf16>
    %cst_53 = arith.constant dense<0.000000e+00> : vector<8x8xf32>
    %190 = tpu.matmul %188, %189, %cst_53 {dimension_numbers = #tpu.dot_dimension_numbers<[1], [0], [0], [1], [0, 0, 1, 1], [], []>} : vector<8x8xbf16>, vector<8x8xbf16>, vector<8x8xf32> -> vector<8x8xf32>
    %c8_54 = arith.constant 8 : index
    %c24_55 = arith.constant 24 : index
    %191 = vector.load %arg6[%c8_54, %c24_55] : memref<16x32xf32, #tpu.memory_space<vmem>>, vector<8x8xf32>
    tpu.vector_store %arg6[%c8_54, %c24_55], %190 {strides = array<i32>} : memref<16x32xf32, #tpu.memory_space<vmem>>, vector<8x8xf32>,
    %c0_56 = arith.constant 0 : index
    %c0_57 = arith.constant 0 : index
    %192 = vector.load %arg6[%c0_56, %c0_57] : memref<16x32xf32, #tpu.memory_space<vmem>>, vector<16x32xf32>
    %193 = arith.truncf %192 : vector<16x32xf32> to vector<16x32xbf16>
    %c0_58 = arith.constant 0 : index
    %c0_59 = arith.constant 0 : index
    %194 = vector.load %arg3[%c0_58, %c0_59] : memref<32x32xbf16, #tpu.memory_space<vmem>>, vector<32x32xbf16>
    %cst_60 = arith.constant dense<0.000000e+00> : vector<16x32xf32>
    %195 = tpu.matmul %193, %194, %cst_60 {dimension_numbers = #tpu.dot_dimension_numbers<[1], [0], [0], [1], [0, 0, 1, 1], [], []>} : vector<16x32xbf16>, vector<32x32xbf16>, vector<16x32xf32> -> vector<16x32xf32>
    %c0_61 = arith.constant 0 : index
    %c0_62 = arith.constant 0 : index
    %196 = vector.load %arg4[%c0_61, %c0_62] : memref<1x32xf32, #tpu.memory_space<vmem>>, vector<1x32xf32>
    %197 = vector.broadcast %196 : vector<1x32xf32> to vector<16x32xf32>
    %198 = arith.addf %195, %197 : vector<16x32xf32>
    %c0_63 = arith.constant 0 : index
    %c0_64 = arith.constant 0 : index
    %199 = vector.load %arg5[%c0_63, %c0_64] : memref<16x32xf32, #tpu.memory_space<vmem>>, vector<16x32xf32>
    tpu.vector_store %arg5[%c0_63, %c0_64], %198 {strides = array<i32>} : memref<16x32xf32, #tpu.memory_space<vmem>>, vector<16x32xf32>,
    return
  }
  func.func @transform_0(%arg0: i32) -> (i32, i32) {
    %c0_i32 = arith.constant 0 : i32
    %c0_i32_0 = arith.constant 0 : i32
    %c0_i32_1 = arith.constant 0 : i32
    return %c0_i32, %c0_i32_0 : i32, i32
  }
  func.func @transform_1(%arg0: i32) -> (i32, i32) {
    %c0_i32 = arith.constant 0 : i32
    %c0_i32_0 = arith.constant 0 : i32
    %c0_i32_1 = arith.constant 0 : i32
    return %c0_i32, %c0_i32_0 : i32, i32
  }
  func.func @transform_2(%arg0: i32) -> (i32, i32) {
    %c0_i32 = arith.constant 0 : i32
    %c0_i32_0 = arith.constant 0 : i32
    %c0_i32_1 = arith.constant 0 : i32
    return %c0_i32, %c0_i32_0 : i32, i32
  }
  func.func @transform_3(%arg0: i32) -> (i32, i32) {
    %c0_i32 = arith.constant 0 : i32
    %c0_i32_0 = arith.constant 0 : i32
    %c0_i32_1 = arith.constant 0 : i32
    return %c0_i32, %c0_i32_0 : i32, i32
  }
  func.func @transform_4(%arg0: i32) -> (i32, i32) {
    %c0_i32 = arith.constant 0 : i32
    %c0_i32_0 = arith.constant 0 : i32
    %c0_i32_1 = arith.constant 0 : i32
    return %c0_i32, %c0_i32_0 : i32, i32
  }
}

</mosaic_0001>

<llo_original>
// kernel: tpu_custom_call.1
$region0: #{tpu_custom_call.1}
  #allocation0 [shape = 'u32[]', space=smem, size = 0x4, offset = 0x4, fixed_abs, tag = 'smem constant byte address 0x4 - core index']
  #allocation1 [shape = 'u32[144,128]{1,0:T(1,128)}', space=vmem, size = 0x12000, scoped, tag = 'internal scratch']
  #allocation2 [shape = 'f32[16,32]{1,0:T(8,128)}', space=vmem, size = 0x2000, scoped, tag = 'scratch operand']
  %s0 = inlined_call_operand.hbm [shape: bf16[16,32], index: 0, kind: input, shape index: {}]
  %s1 = inlined_call_operand.hbm [shape: bf16[32,96], index: 1, kind: input, shape index: {}]
  %s2 = inlined_call_operand.hbm [shape: bf16[32,32], index: 2, kind: input, shape index: {}]
  %s3 = inlined_call_operand.vmem [shape: f32[1,32], index: 3, kind: input, shape index: {}]
  %s4 = inlined_call_operand.hbm [shape: f32[16,32], index: 4, kind: output, shape index: {}]
  %s5 = sld [smem:[#allocation0]]
  $region38: #{tpu_custom_call.1} parent=0
    _
  %s7 = ssub.s32 1, %s5
  %s8 = scalar_select 0, %s7, %s5
  $region1: #{tpu_custom_call.1} parent=0
    #allocation3 [shape = 'u8[4096]{0}', space=vmem, size = 0x1000, scoped, tag = 'input window, operand 0, single buffered']
    #allocation4 [shape = 's32[1]{0}', space=sflag, size = 0x4, scoped, tag = 'scoped memory for tpu_custom_call.1']
    #allocation5 [shape = 's32[1]{0}', space=sflag, size = 0x4, scoped, tag = 'scoped memory for tpu_custom_call.1']
    #allocation6 [shape = 'u8[8192]{0}', space=vmem, size = 0x2000, scoped, tag = 'input window, operand 1, single buffered']
    #allocation7 [shape = 's32[1]{0}', space=sflag, size = 0x4, scoped, tag = 'scoped memory for tpu_custom_call.1']
    #allocation8 [shape = 'u8[8192]{0}', space=vmem, size = 0x2000, scoped, tag = 'input window, operand 2, single buffered']
    #allocation9 [shape = 'u8[8192]{0}', space=vmem, size = 0x2000, scoped, tag = 'output window, operand 0, single buffered']
    %9 = vsyncpa [#allocation4], 0
    %10 = vsyncpa [#allocation7], 0
    %11 = vsyncpa [#allocation5], 0
    // Predicated region
    $region2: #{tpu_custom_call.1} parent=1 // pred_check
      _
    $region3: #{tpu_custom_call.1} parent=1 // pred_check_branch
      %13 = sbr.rel (0) target = $region5
    $region4: #{tpu_custom_call.1} parent=1 // pred_region
      %s15 = ssub.s32 128, 128
      %16 = vsyncadd [#allocation4], %s15
      %s17 = sshll.u32 [#allocation3], 4
      %s18 = int_to_ptr.vmem [resolvable:$true] %s17
      %23 = dma.hbm_to_vmem [thread:$0]  %s0, 128, %s18, [#allocation4], 64, 64, 4
    $region5: #{tpu_custom_call.1} parent=1 // pred_fallthru
      _
    // Predicated region
    $region6: #{tpu_custom_call.1} parent=1 // pred_check
      _
    $region7: #{tpu_custom_call.1} parent=1 // pred_check_branch
      %25 = sbr.rel (0) target = $region9
    $region8: #{tpu_custom_call.1} parent=1 // pred_region
      %s27 = ssub.s32 256, 256
      %28 = vsyncadd [#allocation7], %s27
      %s29 = sshll.u32 [#allocation6], 4
      %s30 = int_to_ptr.vmem [resolvable:$true] %s29
      %35 = dma.hbm_to_vmem [thread:$0]  %s1, 256, %s30, [#allocation7], 64, 64, 4
    $region9: #{tpu_custom_call.1} parent=1 // pred_fallthru
      _
    // Predicated region
    $region10: #{tpu_custom_call.1} parent=1 // pred_check
      _
    $region11: #{tpu_custom_call.1} parent=1 // pred_check_branch
      %37 = sbr.rel (0) target = $region13
    $region12: #{tpu_custom_call.1} parent=1 // pred_region
      %s39 = ssub.s32 256, 256
      %40 = vsyncadd [#allocation7], %s39
      %s41 = sshll.u32 [#allocation8], 4
      %s42 = int_to_ptr.vmem [resolvable:$true] %s41
      %47 = dma.hbm_to_vmem [thread:$0]  %s2, 256, %s42, [#allocation7], 64, 64, 4
    $region13: #{tpu_custom_call.1} parent=1 // pred_fallthru
      _
    // Predicated region
    $region14: #{tpu_custom_call.1} parent=1 // pred_check
      _
    $region15: #{tpu_custom_call.1} parent=1 // pred_check_branch
      %49 = sbr.rel (0) target = $region17
    $region16: #{tpu_custom_call.1} parent=1 // pred_region
      _
    $region17: #{tpu_custom_call.1} parent=1 // pred_fallthru
      _
    // Predicated region
    $region18: #{tpu_custom_call.1} parent=1 // pred_check
      _
    $region19: #{tpu_custom_call.1} parent=1 // pred_check_branch
      %51 = sbr.rel (0) target = $region21
    $region20: #{tpu_custom_call.1} parent=1 // pred_region
      %52 = dma.done [#allocation4], 128
    $region21: #{tpu_custom_call.1} parent=1 // pred_fallthru
      _
    // Predicated region
    $region22: #{tpu_custom_call.1} parent=1 // pred_check
      _
    $region23: #{tpu_custom_call.1} parent=1 // pred_check_branch
      %54 = sbr.rel (0) target = $region25
    $region24: #{tpu_custom_call.1} parent=1 // pred_region
      %55 = dma.done [#allocation7], 256
    $region25: #{tpu_custom_call.1} parent=1 // pred_fallthru
      _
    // Predicated region
    $region26: #{tpu_custom_call.1} parent=1 // pred_check
      _
    $region27: #{tpu_custom_call.1} parent=1 // pred_check_branch
      %57 = sbr.rel (0) target = $region29
    $region28: #{tpu_custom_call.1} parent=1 // pred_region
      %58 = dma.done [#allocation7], 256
    $region29: #{tpu_custom_call.1} parent=1 // pred_fallthru
      _
    %v60 = vld [vmem:[#allocation3] sm:$0xf]
    %v61 = vld [vmem:[#allocation3 + $0x4] sm:$0xf]
    %v62 = vld [vmem:[#allocation6] sm:$0xf]
    %v63 = vld [vmem:[#allocation6 + $0x4] sm:$0xf]
    %v64 = vld [vmem:[#allocation6 + $0x8] sm:$0xf]
    %v65 = vld [vmem:[#allocation6 + $0xc] sm:$0xf]
    %v68 = vunpack.c.l.b16 %v60
    %v69 = vunpack.c.l.b16 %v61
    %v70 = vpack.c.b16 %v69, %v68
    %v75 = vunpack.c.l.b16 %v62
    %v76 = vunpack.c.l.b16 %v63
    %v77 = vunpack.c.l.b16 %v64
    %v78 = vunpack.c.l.b16 %v65
    %v79 = vpack.c.b16 %v76, %v75
    %v80 = vpack.c.b16 %v78, %v77
    %vm83 = vcmask 261120
    %v85 = vsel %vm83, %v70, 0
    %87 = vmatprep.subr.bf16.mxu0 0
    %88 = vmatpush1.bf16.msra.mxu0 %v79
    %89 = vmatprep.subr.bf16.mxu0 0
    %90 = vmatpush1.bf16.msra.mxu0 %v80
    %91 = vmatprep.subr.bf16.mxu0 0
    %92 = vmatpush1.bf16.msra.mxu0 0
    %93 = vmatprep.subr.bf16.mxu0 0
    %94 = vmatpush1.bf16.msra.mxu0 0
    %95 = vmatprep.subr.bf16.mxu0 0
    %96 = vmatpush1.bf16.msra.mxu0 0
    %97 = vmatprep.subr.bf16.mxu0 0
    %98 = vmatpush1.bf16.msra.mxu0 0
    %99 = vmatprep.subr.bf16.mxu0 0
    %100 = vmatpush1.bf16.msra.mxu0 0
    %101 = vmatprep.subr.bf16.mxu0 0
    %102 = vmatpush1.bf16.msra.mxu0 0
    %103 = vmatprep.subr.bf16.mxu0 0
    %104 = vmatpush1.bf16.msra.mxu0 0
    %105 = vmatprep.subr.bf16.mxu0 0
    %106 = vmatpush1.bf16.msra.mxu0 0
    %107 = vmatprep.subr.bf16.mxu0 0
    %108 = vmatpush1.bf16.msra.mxu0 0
    %109 = vmatprep.subr.bf16.mxu0 0
    %110 = vmatpush1.bf16.msra.mxu0 0
    %111 = vmatprep.subr.bf16.mxu0 0
    %112 = vmatpush1.bf16.msra.mxu0 0
    %113 = vmatprep.subr.bf16.mxu0 0
    %114 = vmatpush1.bf16.msra.mxu0 0
    %115 = vmatprep.subr.bf16.mxu0 0
    %116 = vmatpush1.bf16.msra.mxu0 0
    %117 = vmatprep.subr.bf16.mxu0 0
    %118 = vmatpush1.bf16.msra.mxu0 0
    %119 = vmatprep.mubr.bf16.mxu0 0
    %120 = vmatmul.mubr.bf16.gmra.mrb[0].mxu0 %v85
    %v121 = vpop.f32.mrb[0].mxu0
    %v122 = vadd.f32 0.0, %v121
    %v123 = vpop.f32.mrb[0].mxu0
    %v124 = vpop.f32.mrb[0].mxu0
    %v125 = vadd.f32 0.0, %v124
    %v126 = vpop.f32.mrb[0].mxu0
    %127 = vdwg.mxu0
    %v128 = vlaneseq
    %v129 = vshrl.u32 %v128, 7
    %v130 = vlaneseq
    %v131 = vand.u32 %v130, 127
    %vm132 = vcmp.ge.s32.totalorder %v129, %v131
    %v133 = vpack.c.bf16 %v122, %v122
    %135 = vrot.lane.b32.xlu0 %v133, 96
    %v136 = vpop.permute.xlu0 %135
    %vm137 = vcmask 64512
    %v139 = vsel %vm137, %v133, 0
    %v142 = vsel %vm137, %v136, 0
    %144 = vmatprep.subr.bf16.mxu0 0
    %145 = vmatpush1.bf16.xpose.msra.mxu0 %v142
    %146 = vmatprep.subr.bf16.mxu0 0
    %147 = vmatpush1.bf16.xpose.msra.mxu0 0
    %148 = vmatprep.subr.bf16.mxu0 0
    %149 = vmatpush1.bf16.xpose.msra.mxu0 0
    %150 = vmatprep.subr.bf16.mxu0 0
    %151 = vmatpush1.bf16.xpose.msra.mxu0 0
    %152 = vmatprep.subr.bf16.mxu0 0
    %153 = vmatpush1.bf16.xpose.msra.mxu0 0
    %154 = vmatprep.subr.bf16.mxu0 0
    %155 = vmatpush1.bf16.xpose.msra.mxu0 0
    %156 = vmatprep.subr.bf16.mxu0 0
    %157 = vmatpush1.bf16.xpose.msra.mxu0 0
    %158 = vmatprep.subr.bf16.mxu0 0
    %159 = vmatpush1.bf16.xpose.msra.mxu0 0
    %160 = vmatprep.subr.bf16.mxu0 0
    %161 = vmatpush1.bf16.xpose.msra.mxu0 0
    %162 = vmatprep.subr.bf16.mxu0 0
    %163 = vmatpush1.bf16.xpose.msra.mxu0 0
    %164 = vmatprep.subr.bf16.mxu0 0
    %165 = vmatpush1.bf16.xpose.msra.mxu0 0
    %166 = vmatprep.subr.bf16.mxu0 0
    %167 = vmatpush1.bf16.xpose.msra.mxu0 0
    %168 = vmatprep.subr.bf16.mxu0 0
    %169 = vmatpush1.bf16.xpose.msra.mxu0 0
    %170 = vmatprep.subr.bf16.mxu0 0
    %171 = vmatpush1.bf16.xpose.msra.mxu0 0
    %172 = vmatprep.subr.bf16.mxu0 0
    %173 = vmatpush1.bf16.xpose.msra.mxu0 0
    %174 = vmatprep.subr.bf16.mxu0 0
    %175 = vmatpush1.bf16.xpose.msra.mxu0 0
    %176 = vmatprep.mubr.bf16.mxu0 0
    %177 = vmatmul.mubr.bf16.gmra.mrb[0].mxu0 %v139
    %v178 = vpop.f32.mrb[0].mxu0
    %v179 = vadd.f32 0.0, %v178
    %v180 = vpop.f32.mrb[0].mxu0
    %v181 = vpop.f32.mrb[0].mxu0
    %v182 = vpop.f32.mrb[0].mxu0
    %183 = vdwg.mxu0
    %v184 = vsel %vm132, %v179, -inf
    %v185 = vsel %vm137, %v184, -inf
    %186 = vmax.xlane.f32.xlu0 %v185
    %v187 = vpop.xlane.xlu0 %186
    %v188 = vsub.f32 %v184, %v187
    %v189 = vmul.f32 %v188, 1.442695
    %v190 = vpow.pop %v189
    %v191 = vsel %vm137, %v190, 0.0
    %192 = vadd.xlane.f32.xlu0 %v191
    %v193 = vpop.xlane.xlu0 %192
    %v194 = vrcp.pop %v193
    %v195 = vmul.f32 %v190, %v194
    %v196 = vpack.c.bf16 %v195, %v195
    %197 = vrot.lane.b32.xlu0 %v133, 64
    %v198 = vpop.permute.xlu0 %197
    %v200 = vsel %vm137, %v196, 0
    %vm202 = vcmask 1043456
    %v204 = vsel %vm202, %v198, 0
    %206 = vmatprep.subr.bf16.mxu0 0
    %207 = vmatpush1.bf16.msra.mxu0 %v204
    %208 = vmatprep.subr.bf16.mxu0 0
    %209 = vmatpush1.bf16.msra.mxu0 0
    %210 = vmatprep.subr.bf16.mxu0 0
    %211 = vmatpush1.bf16.msra.mxu0 0
    %212 = vmatprep.subr.bf16.mxu0 0
    %213 = vmatpush1.bf16.msra.mxu0 0
    %214 = vmatprep.subr.bf16.mxu0 0
    %215 = vmatpush1.bf16.msra.mxu0 0
    %216 = vmatprep.subr.bf16.mxu0 0
    %217 = vmatpush1.bf16.msra.mxu0 0
    %218 = vmatprep.subr.bf16.mxu0 0
    %219 = vmatpush1.bf16.msra.mxu0 0
    %220 = vmatprep.subr.bf16.mxu0 0
    %221 = vmatpush1.bf16.msra.mxu0 0
    %222 = vmatprep.subr.bf16.mxu0 0
    %223 = vmatpush1.bf16.msra.mxu0 0
    %224 = vmatprep.subr.bf16.mxu0 0
    %225 = vmatpush1.bf16.msra.mxu0 0
    %226 = vmatprep.subr.bf16.mxu0 0
    %227 = vmatpush1.bf16.msra.mxu0 0
    %228 = vmatprep.subr.bf16.mxu0 0
    %229 = vmatpush1.bf16.msra.mxu0 0
    %230 = vmatprep.subr.bf16.mxu0 0
    %231 = vmatpush1.bf16.msra.mxu0 0
    %232 = vmatprep.subr.bf16.mxu0 0
    %233 = vmatpush1.bf16.msra.mxu0 0
    %234 = vmatprep.subr.bf16.mxu0 0
    %235 = vmatpush1.bf16.msra.mxu0 0
    %236 = vmatprep.subr.bf16.mxu0 0
    %237 = vmatpush1.bf16.msra.mxu0 0
    %238 = vmatprep.mubr.bf16.mxu0 0
    %239 = vmatmul.mubr.bf16.gmra.mrb[0].mxu0 %v200
    %v240 = vpop.f32.mrb[0].mxu0
    %v241 = vadd.f32 0.0, %v240
    %v242 = vpop.f32.mrb[0].mxu0
    %v243 = vpop.f32.mrb[0].mxu0
    %v244 = vpop.f32.mrb[0].mxu0
    %245 = vdwg.mxu0
    %246 = vst.msk [vmem:[#allocation2] sm:$0xff] %vm137, %v241
    %247 = vrot.lane.b32.xlu0 %v133, 120
    %v248 = vpop.permute.xlu0 %247
    %249 = vrot.lane.b32.xlu0 %v133, 88
    %v250 = vpop.permute.xlu0 %249
    %v252 = vsel %vm137, %v248, 0
    %v255 = vsel %vm137, %v250, 0
    %257 = vmatprep.subr.bf16.mxu0 0
    %258 = vmatpush1.bf16.xpose.msra.mxu0 %v255
    %259 = vmatprep.subr.bf16.mxu0 0
    %260 = vmatpush1.bf16.xpose.msra.mxu0 0
    %261 = vmatprep.subr.bf16.mxu0 0
    %262 = vmatpush1.bf16.xpose.msra.mxu0 0
    %263 = vmatprep.subr.bf16.mxu0 0
    %264 = vmatpush1.bf16.xpose.msra.mxu0 0
    %265 = vmatprep.subr.bf16.mxu0 0
    %266 = vmatpush1.bf16.xpose.msra.mxu0 0
    %267 = vmatprep.subr.bf16.mxu0 0
    %268 = vmatpush1.bf16.xpose.msra.mxu0 0
    %269 = vmatprep.subr.bf16.mxu0 0
    %270 = vmatpush1.bf16.xpose.msra.mxu0 0
    %271 = vmatprep.subr.bf16.mxu0 0
    %272 = vmatpush1.bf16.xpose.msra.mxu0 0
    %273 = vmatprep.subr.bf16.mxu0 0
    %274 = vmatpush1.bf16.xpose.msra.mxu0 0
    %275 = vmatprep.subr.bf16.mxu0 0
    %276 = vmatpush1.bf16.xpose.msra.mxu0 0
    %277 = vmatprep.subr.bf16.mxu0 0
    %278 = vmatpush1.bf16.xpose.msra.mxu0 0
    %279 = vmatprep.subr.bf16.mxu0 0
    %280 = vmatpush1.bf16.xpose.msra.mxu0 0
    %281 = vmatprep.subr.bf16.mxu0 0
    %282 = vmatpush1.bf16.xpose.msra.mxu0 0
    %283 = vmatprep.subr.bf16.mxu0 0
    %284 = vmatpush1.bf16.xpose.msra.mxu0 0
    %285 = vmatprep.subr.bf16.mxu0 0
    %286 = vmatpush1.bf16.xpose.msra.mxu0 0
    %287 = vmatprep.subr.bf16.mxu0 0
    %288 = vmatpush1.bf16.xpose.msra.mxu0 0
    %289 = vmatprep.mubr.bf16.mxu0 0
    %290 = vmatmul.mubr.bf16.gmra.mrb[0].mxu0 %v252
    %v291 = vpop.f32.mrb[0].mxu0
    %v292 = vadd.f32 0.0, %v291
    %v293 = vpop.f32.mrb[0].mxu0
    %v294 = vpop.f32.mrb[0].mxu0
    %v295 = vpop.f32.mrb[0].mxu0
    %296 = vdwg.mxu0
    %v297 = vsel %vm132, %v292, -inf
    %v298 = vsel %vm137, %v297, -inf
    %299 = vmax.xlane.f32.xlu0 %v298
    %v300 = vpop.xlane.xlu0 %299
    %v301 = vsub.f32 %v297, %v300
    %v302 = vmul.f32 %v301, 1.442695
    %v303 = vpow.pop %v302
    %v304 = vsel %vm137, %v303, 0.0
    %305 = vadd.xlane.f32.xlu0 %v304
    %v306 = vpop.xlane.xlu0 %305
    %v307 = vrcp.pop %v306
    %v308 = vmul.f32 %v303, %v307
    %v309 = vpack.c.bf16 %v308, %v308
    %310 = vrot.lane.b32.xlu0 %v133, 56
    %v311 = vpop.permute.xlu0 %310
    %v313 = vsel %vm137, %v309, 0
    %v316 = vsel %vm202, %v311, 0
    %318 = vmatprep.subr.bf16.mxu0 0
    %319 = vmatpush1.bf16.msra.mxu0 %v316
    %320 = vmatprep.subr.bf16.mxu0 0
    %321 = vmatpush1.bf16.msra.mxu0 0
    %322 = vmatprep.subr.bf16.mxu0 0
    %323 = vmatpush1.bf16.msra.mxu0 0
    %324 = vmatprep.subr.bf16.mxu0 0
    %325 = vmatpush1.bf16.msra.mxu0 0
    %326 = vmatprep.subr.bf16.mxu0 0
    %327 = vmatpush1.bf16.msra.mxu0 0
    %328 = vmatprep.subr.bf16.mxu0 0
    %329 = vmatpush1.bf16.msra.mxu0 0
    %330 = vmatprep.subr.bf16.mxu0 0
    %331 = vmatpush1.bf16.msra.mxu0 0
    %332 = vmatprep.subr.bf16.mxu0 0
    %333 = vmatpush1.bf16.msra.mxu0 0
    %334 = vmatprep.subr.bf16.mxu0 0
    %335 = vmatpush1.bf16.msra.mxu0 0
    %336 = vmatprep.subr.bf16.mxu0 0
    %337 = vmatpush1.bf16.msra.mxu0 0
    %338 = vmatprep.subr.bf16.mxu0 0
    %339 = vmatpush1.bf16.msra.mxu0 0
    %340 = vmatprep.subr.bf16.mxu0 0
    %341 = vmatpush1.bf16.msra.mxu0 0
    %342 = vmatprep.subr.bf16.mxu0 0
    %343 = vmatpush1.bf16.msra.mxu0 0
    %344 = vmatprep.subr.bf16.mxu0 0
    %345 = vmatpush1.bf16.msra.mxu0 0
    %346 = vmatprep.subr.bf16.mxu0 0
    %347 = vmatpush1.bf16.msra.mxu0 0
    %348 = vmatprep.subr.bf16.mxu0 0
    %349 = vmatpush1.bf16.msra.mxu0 0
    %350 = vmatprep.mubr.bf16.mxu0 0
    %351 = vmatmul.mubr.bf16.gmra.mrb[0].mxu0 %v313
    %v352 = vpop.f32.mrb[0].mxu0
    %v353 = vadd.f32 0.0, %v352
    %v354 = vpop.f32.mrb[0].mxu0
    %v355 = vpop.f32.mrb[0].mxu0
    %v356 = vpop.f32.mrb[0].mxu0
    %357 = vdwg.mxu0
    %359 = vrot.lane.b32.xlu0 %v353, 8
    %v360 = vpop.permute.xlu0 %359
    %vm362 = vcmask 130112
    %363 = vst.msk [vmem:[#allocation2] sm:$0xff] %vm362, %v360
    %364 = vrot.lane.b32.xlu0 %v133, 112
    %v365 = vpop.permute.xlu0 %364
    %366 = vrot.lane.b32.xlu0 %v133, 80
    %v367 = vpop.permute.xlu0 %366
    %v369 = vsel %vm137, %v365, 0
    %v372 = vsel %vm137, %v367, 0
    %374 = vmatprep.subr.bf16.mxu0 0
    %375 = vmatpush1.bf16.xpose.msra.mxu0 %v372
    %376 = vmatprep.subr.bf16.mxu0 0
    %377 = vmatpush1.bf16.xpose.msra.mxu0 0
    %378 = vmatprep.subr.bf16.mxu0 0
    %379 = vmatpush1.bf16.xpose.msra.mxu0 0
    %380 = vmatprep.subr.bf16.mxu0 0
    %381 = vmatpush1.bf16.xpose.msra.mxu0 0
    %382 = vmatprep.subr.bf16.mxu0 0
    %383 = vmatpush1.bf16.xpose.msra.mxu0 0
    %384 = vmatprep.subr.bf16.mxu0 0
    %385 = vmatpush1.bf16.xpose.msra.mxu0 0
    %386 = vmatprep.subr.bf16.mxu0 0
    %387 = vmatpush1.bf16.xpose.msra.mxu0 0
    %388 = vmatprep.subr.bf16.mxu0 0
    %389 = vmatpush1.bf16.xpose.msra.mxu0 0
    %390 = vmatprep.subr.bf16.mxu0 0
    %391 = vmatpush1.bf16.xpose.msra.mxu0 0
    %392 = vmatprep.subr.bf16.mxu0 0
    %393 = vmatpush1.bf16.xpose.msra.mxu0 0
    %394 = vmatprep.subr.bf16.mxu0 0
    %395 = vmatpush1.bf16.xpose.msra.mxu0 0
    %396 = vmatprep.subr.bf16.mxu0 0
    %397 = vmatpush1.bf16.xpose.msra.mxu0 0
    %398 = vmatprep.subr.bf16.mxu0 0
    %399 = vmatpush1.bf16.xpose.msra.mxu0 0
    %400 = vmatprep.subr.bf16.mxu0 0
    %401 = vmatpush1.bf16.xpose.msra.mxu0 0
    %402 = vmatprep.subr.bf16.mxu0 0
    %403 = vmatpush1.bf16.xpose.msra.mxu0 0
    %404 = vmatprep.subr.bf16.mxu0 0
    %405 = vmatpush1.bf16.xpose.msra.mxu0 0
    %406 = vmatprep.mubr.bf16.mxu0 0
    %407 = vmatmul.mubr.bf16.gmra.mrb[0].mxu0 %v369
    %v408 = vpop.f32.mrb[0].mxu0
    %v409 = vadd.f32 0.0, %v408
    %v410 = vpop.f32.mrb[0].mxu0
    %v411 = vpop.f32.mrb[0].mxu0
    %v412 = vpop.f32.mrb[0].mxu0
    %413 = vdwg.mxu0
    %v414 = vsel %vm132, %v409, -inf
    %v415 = vsel %vm137, %v414, -inf
    %416 = vmax.xlane.f32.xlu0 %v415
    %v417 = vpop.xlane.xlu0 %416
    %v418 = vsub.f32 %v414, %v417
    %v419 = vmul.f32 %v418, 1.442695
    %v420 = vpow.pop %v419
    %v421 = vsel %vm137, %v420, 0.0
    %422 = vadd.xlane.f32.xlu0 %v421
    %v423 = vpop.xlane.xlu0 %422
    %v424 = vrcp.pop %v423
    %v425 = vmul.f32 %v420, %v424
    %v426 = vpack.c.bf16 %v425, %v425
    %427 = vrot.lane.b32.xlu0 %v133, 48
    %v428 = vpop.permute.xlu0 %427
    %v430 = vsel %vm137, %v426, 0
    %v433 = vsel %vm202, %v428, 0
    %435 = vmatprep.subr.bf16.mxu0 0
    %436 = vmatpush1.bf16.msra.mxu0 %v433
    %437 = vmatprep.subr.bf16.mxu0 0
    %438 = vmatpush1.bf16.msra.mxu0 0
    %439 = vmatprep.subr.bf16.mxu0 0
    %440 = vmatpush1.bf16.msra.mxu0 0
    %441 = vmatprep.subr.bf16.mxu0 0
    %442 = vmatpush1.bf16.msra.mxu0 0
    %443 = vmatprep.subr.bf16.mxu0 0
    %444 = vmatpush1.bf16.msra.mxu0 0
    %445 = vmatprep.subr.bf16.mxu0 0
    %446 = vmatpush1.bf16.msra.mxu0 0
    %447 = vmatprep.subr.bf16.mxu0 0
    %448 = vmatpush1.bf16.msra.mxu0 0
    %449 = vmatprep.subr.bf16.mxu0 0
    %450 = vmatpush1.bf16.msra.mxu0 0
    %451 = vmatprep.subr.bf16.mxu0 0
    %452 = vmatpush1.bf16.msra.mxu0 0
    %453 = vmatprep.subr.bf16.mxu0 0
    %454 = vmatpush1.bf16.msra.mxu0 0
    %455 = vmatprep.subr.bf16.mxu0 0
    %456 = vmatpush1.bf16.msra.mxu0 0
    %457 = vmatprep.subr.bf16.mxu0 0
    %458 = vmatpush1.bf16.msra.mxu0 0
    %459 = vmatprep.subr.bf16.mxu0 0
    %460 = vmatpush1.bf16.msra.mxu0 0
    %461 = vmatprep.subr.bf16.mxu0 0
    %462 = vmatpush1.bf16.msra.mxu0 0
    %463 = vmatprep.subr.bf16.mxu0 0
    %464 = vmatpush1.bf16.msra.mxu0 0
    %465 = vmatprep.subr.bf16.mxu0 0
    %466 = vmatpush1.bf16.msra.mxu0 0
    %467 = vmatprep.mubr.bf16.mxu0 0
    %468 = vmatmul.mubr.bf16.gmra.mrb[0].mxu0 %v430
    %v469 = vpop.f32.mrb[0].mxu0
    %v470 = vadd.f32 0.0, %v469
    %v471 = vpop.f32.mrb[0].mxu0
    %v472 = vpop.f32.mrb[0].mxu0
    %v473 = vpop.f32.mrb[0].mxu0
    %474 = vdwg.mxu0
    %476 = vrot.lane.b32.xlu0 %v470, 16
    %v477 = vpop.permute.xlu0 %476
    %vm479 = vcmask 195712
    %480 = vst.msk [vmem:[#allocation2] sm:$0xff] %vm479, %v477
    %481 = vrot.lane.b32.xlu0 %v133, 104
    %v482 = vpop.permute.xlu0 %481
    %483 = vrot.lane.b32.xlu0 %v133, 72
    %v484 = vpop.permute.xlu0 %483
    %v486 = vsel %vm137, %v482, 0
    %v489 = vsel %vm137, %v484, 0
    %491 = vmatprep.subr.bf16.mxu0 0
    %492 = vmatpush1.bf16.xpose.msra.mxu0 %v489
    %493 = vmatprep.subr.bf16.mxu0 0
    %494 = vmatpush1.bf16.xpose.msra.mxu0 0
    %495 = vmatprep.subr.bf16.mxu0 0
    %496 = vmatpush1.bf16.xpose.msra.mxu0 0
    %497 = vmatprep.subr.bf16.mxu0 0
    %498 = vmatpush1.bf16.xpose.msra.mxu0 0
    %499 = vmatprep.subr.bf16.mxu0 0
    %500 = vmatpush1.bf16.xpose.msra.mxu0 0
    %501 = vmatprep.subr.bf16.mxu0 0
    %502 = vmatpush1.bf16.xpose.msra.mxu0 0
    %503 = vmatprep.subr.bf16.mxu0 0
    %504 = vmatpush1.bf16.xpose.msra.mxu0 0
    %505 = vmatprep.subr.bf16.mxu0 0
    %506 = vmatpush1.bf16.xpose.msra.mxu0 0
    %507 = vmatprep.subr.bf16.mxu0 0
    %508 = vmatpush1.bf16.xpose.msra.mxu0 0
    %509 = vmatprep.subr.bf16.mxu0 0
    %510 = vmatpush1.bf16.xpose.msra.mxu0 0
    %511 = vmatprep.subr.bf16.mxu0 0
    %512 = vmatpush1.bf16.xpose.msra.mxu0 0
    %513 = vmatprep.subr.bf16.mxu0 0
    %514 = vmatpush1.bf16.xpose.msra.mxu0 0
    %515 = vmatprep.subr.bf16.mxu0 0
    %516 = vmatpush1.bf16.xpose.msra.mxu0 0
    %517 = vmatprep.subr.bf16.mxu0 0
    %518 = vmatpush1.bf16.xpose.msra.mxu0 0
    %519 = vmatprep.subr.bf16.mxu0 0
    %520 = vmatpush1.bf16.xpose.msra.mxu0 0
    %521 = vmatprep.subr.bf16.mxu0 0
    %522 = vmatpush1.bf16.xpose.msra.mxu0 0
    %523 = vmatprep.mubr.bf16.mxu0 0
    %524 = vmatmul.mubr.bf16.gmra.mrb[0].mxu0 %v486
    %v525 = vpop.f32.mrb[0].mxu0
    %v526 = vadd.f32 0.0, %v525
    %v527 = vpop.f32.mrb[0].mxu0
    %v528 = vpop.f32.mrb[0].mxu0
    %v529 = vpop.f32.mrb[0].mxu0
    %530 = vdwg.mxu0
    %v531 = vsel %vm132, %v526, -inf
    %v532 = vsel %vm137, %v531, -inf
    %533 = vmax.xlane.f32.xlu0 %v532
    %v534 = vpop.xlane.xlu0 %533
    %v535 = vsub.f32 %v531, %v534
    %v536 = vmul.f32 %v535, 1.442695
    %v537 = vpow.pop %v536
    %v538 = vsel %vm137, %v537, 0.0
    %539 = vadd.xlane.f32.xlu0 %v538
    %v540 = vpop.xlane.xlu0 %539
    %v541 = vrcp.pop %v540
    %v542 = vmul.f32 %v537, %v541
    %v543 = vpack.c.bf16 %v542, %v542
    %544 = vrot.lane.b32.xlu0 %v133, 40
    %v545 = vpop.permute.xlu0 %544
    %v547 = vsel %vm137, %v543, 0
    %v550 = vsel %vm202, %v545, 0
    %552 = vmatprep.subr.bf16.mxu0 0
    %553 = vmatpush1.bf16.msra.mxu0 %v550
    %554 = vmatprep.subr.bf16.mxu0 0
    %555 = vmatpush1.bf16.msra.mxu0 0
    %556 = vmatprep.subr.bf16.mxu0 0
    %557 = vmatpush1.bf16.msra.mxu0 0
    %558 = vmatprep.subr.bf16.mxu0 0
    %559 = vmatpush1.bf16.msra.mxu0 0
    %560 = vmatprep.subr.bf16.mxu0 0
    %561 = vmatpush1.bf16.msra.mxu0 0
    %562 = vmatprep.subr.bf16.mxu0 0
    %563 = vmatpush1.bf16.msra.mxu0 0
    %564 = vmatprep.subr.bf16.mxu0 0
    %565 = vmatpush1.bf16.msra.mxu0 0
    %566 = vmatprep.subr.bf16.mxu0 0
    %567 = vmatpush1.bf16.msra.mxu0 0
    %568 = vmatprep.subr.bf16.mxu0 0
    %569 = vmatpush1.bf16.msra.mxu0 0
    %570 = vmatprep.subr.bf16.mxu0 0
    %571 = vmatpush1.bf16.msra.mxu0 0
    %572 = vmatprep.subr.bf16.mxu0 0
    %573 = vmatpush1.bf16.msra.mxu0 0
    %574 = vmatprep.subr.bf16.mxu0 0
    %575 = vmatpush1.bf16.msra.mxu0 0
    %576 = vmatprep.subr.bf16.mxu0 0
    %577 = vmatpush1.bf16.msra.mxu0 0
    %578 = vmatprep.subr.bf16.mxu0 0
    %579 = vmatpush1.bf16.msra.mxu0 0
    %580 = vmatprep.subr.bf16.mxu0 0
    %581 = vmatpush1.bf16.msra.mxu0 0
    %582 = vmatprep.subr.bf16.mxu0 0
    %583 = vmatpush1.bf16.msra.mxu0 0
    %584 = vmatprep.mubr.bf16.mxu0 0
    %585 = vmatmul.mubr.bf16.gmra.mrb[0].mxu0 %v547
    %v586 = vpop.f32.mrb[0].mxu0
    %v587 = vadd.f32 0.0, %v586
    %v588 = vpop.f32.mrb[0].mxu0
    %v589 = vpop.f32.mrb[0].mxu0
    %v590 = vpop.f32.mrb[0].mxu0
    %591 = vdwg.mxu0
    %593 = vrot.lane.b32.xlu0 %v587, 24
    %v594 = vpop.permute.xlu0 %593
    %vm596 = vcmask 261312
    %597 = vst.msk [vmem:[#allocation2] sm:$0xff] %vm596, %v594
    %v598 = vpack.c.bf16 %v125, %v125
    %600 = vrot.lane.b32.xlu0 %v598, 96
    %v601 = vpop.permute.xlu0 %600
    %v603 = vsel %vm137, %v598, 0
    %v606 = vsel %vm137, %v601, 0
    %608 = vmatprep.subr.bf16.mxu0 0
    %609 = vmatpush1.bf16.xpose.msra.mxu0 %v606
    %610 = vmatprep.subr.bf16.mxu0 0
    %611 = vmatpush1.bf16.xpose.msra.mxu0 0
    %612 = vmatprep.subr.bf16.mxu0 0
    %613 = vmatpush1.bf16.xpose.msra.mxu0 0
    %614 = vmatprep.subr.bf16.mxu0 0
    %615 = vmatpush1.bf16.xpose.msra.mxu0 0
    %616 = vmatprep.subr.bf16.mxu0 0
    %617 = vmatpush1.bf16.xpose.msra.mxu0 0
    %618 = vmatprep.subr.bf16.mxu0 0
    %619 = vmatpush1.bf16.xpose.msra.mxu0 0
    %620 = vmatprep.subr.bf16.mxu0 0
    %621 = vmatpush1.bf16.xpose.msra.mxu0 0
    %622 = vmatprep.subr.bf16.mxu0 0
    %623 = vmatpush1.bf16.xpose.msra.mxu0 0
    %624 = vmatprep.subr.bf16.mxu0 0
    %625 = vmatpush1.bf16.xpose.msra.mxu0 0
    %626 = vmatprep.subr.bf16.mxu0 0
    %627 = vmatpush1.bf16.xpose.msra.mxu0 0
    %628 = vmatprep.subr.bf16.mxu0 0
    %629 = vmatpush1.bf16.xpose.msra.mxu0 0
    %630 = vmatprep.subr.bf16.mxu0 0
    %631 = vmatpush1.bf16.xpose.msra.mxu0 0
    %632 = vmatprep.subr.bf16.mxu0 0
    %633 = vmatpush1.bf16.xpose.msra.mxu0 0
    %634 = vmatprep.subr.bf16.mxu0 0
    %635 = vmatpush1.bf16.xpose.msra.mxu0 0
    %636 = vmatprep.subr.bf16.mxu0 0
    %637 = vmatpush1.bf16.xpose.msra.mxu0 0
    %638 = vmatprep.subr.bf16.mxu0 0
    %639 = vmatpush1.bf16.xpose.msra.mxu0 0
    %640 = vmatprep.mubr.bf16.mxu0 0
    %641 = vmatmul.mubr.bf16.gmra.mrb[0].mxu0 %v603
    %v642 = vpop.f32.mrb[0].mxu0
    %v643 = vadd.f32 0.0, %v642
    %v644 = vpop.f32.mrb[0].mxu0
    %v645 = vpop.f32.mrb[0].mxu0
    %v646 = vpop.f32.mrb[0].mxu0
    %647 = vdwg.mxu0
    %v648 = vsel %vm132, %v643, -inf
    %v649 = vsel %vm137, %v648, -inf
    %650 = vmax.xlane.f32.xlu0 %v649
    %v651 = vpop.xlane.xlu0 %650
    %v652 = vsub.f32 %v648, %v651
    %v653 = vmul.f32 %v652, 1.442695
    %v654 = vpow.pop %v653
    %v655 = vsel %vm137, %v654, 0.0
    %656 = vadd.xlane.f32.xlu0 %v655
    %v657 = vpop.xlane.xlu0 %656
    %v658 = vrcp.pop %v657
    %v659 = vmul.f32 %v654, %v658
    %v660 = vpack.c.bf16 %v659, %v659
    %661 = vrot.lane.b32.xlu0 %v598, 64
    %v662 = vpop.permute.xlu0 %661
    %v664 = vsel %vm137, %v660, 0
    %v667 = vsel %vm202, %v662, 0
    %669 = vmatprep.subr.bf16.mxu0 0
    %670 = vmatpush1.bf16.msra.mxu0 %v667
    %671 = vmatprep.subr.bf16.mxu0 0
    %672 = vmatpush1.bf16.msra.mxu0 0
    %673 = vmatprep.subr.bf16.mxu0 0
    %674 = vmatpush1.bf16.msra.mxu0 0
    %675 = vmatprep.subr.bf16.mxu0 0
    %676 = vmatpush1.bf16.msra.mxu0 0
    %677 = vmatprep.subr.bf16.mxu0 0
    %678 = vmatpush1.bf16.msra.mxu0 0
    %679 = vmatprep.subr.bf16.mxu0 0
    %680 = vmatpush1.bf16.msra.mxu0 0
    %681 = vmatprep.subr.bf16.mxu0 0
    %682 = vmatpush1.bf16.msra.mxu0 0
    %683 = vmatprep.subr.bf16.mxu0 0
    %684 = vmatpush1.bf16.msra.mxu0 0
    %685 = vmatprep.subr.bf16.mxu0 0
    %686 = vmatpush1.bf16.msra.mxu0 0
    %687 = vmatprep.subr.bf16.mxu0 0
    %688 = vmatpush1.bf16.msra.mxu0 0
    %689 = vmatprep.subr.bf16.mxu0 0
    %690 = vmatpush1.bf16.msra.mxu0 0
    %691 = vmatprep.subr.bf16.mxu0 0
    %692 = vmatpush1.bf16.msra.mxu0 0
    %693 = vmatprep.subr.bf16.mxu0 0
    %694 = vmatpush1.bf16.msra.mxu0 0
    %695 = vmatprep.subr.bf16.mxu0 0
    %696 = vmatpush1.bf16.msra.mxu0 0
    %697 = vmatprep.subr.bf16.mxu0 0
    %698 = vmatpush1.bf16.msra.mxu0 0
    %699 = vmatprep.subr.bf16.mxu0 0
    %700 = vmatpush1.bf16.msra.mxu0 0
    %701 = vmatprep.mubr.bf16.mxu0 0
    %702 = vmatmul.mubr.bf16.gmra.mrb[0].mxu0 %v664
    %v703 = vpop.f32.mrb[0].mxu0
    %v704 = vadd.f32 0.0, %v703
    %v705 = vpop.f32.mrb[0].mxu0
    %v706 = vpop.f32.mrb[0].mxu0
    %v707 = vpop.f32.mrb[0].mxu0
    %708 = vdwg.mxu0
    %709 = vst.msk [vmem:[#allocation2 + $0x8] sm:$0xff] %vm137, %v704
    %710 = vrot.lane.b32.xlu0 %v598, 120
    %v711 = vpop.permute.xlu0 %710
    %712 = vrot.lane.b32.xlu0 %v598, 88
    %v713 = vpop.permute.xlu0 %712
    %v715 = vsel %vm137, %v711, 0
    %v718 = vsel %vm137, %v713, 0
    %720 = vmatprep.subr.bf16.mxu0 0
    %721 = vmatpush1.bf16.xpose.msra.mxu0 %v718
    %722 = vmatprep.subr.bf16.mxu0 0
    %723 = vmatpush1.bf16.xpose.msra.mxu0 0
    %724 = vmatprep.subr.bf16.mxu0 0
    %725 = vmatpush1.bf16.xpose.msra.mxu0 0
    %726 = vmatprep.subr.bf16.mxu0 0
    %727 = vmatpush1.bf16.xpose.msra.mxu0 0
    %728 = vmatprep.subr.bf16.mxu0 0
    %729 = vmatpush1.bf16.xpose.msra.mxu0 0
    %730 = vmatprep.subr.bf16.mxu0 0
    %731 = vmatpush1.bf16.xpose.msra.mxu0 0
    %732 = vmatprep.subr.bf16.mxu0 0
    %733 = vmatpush1.bf16.xpose.msra.mxu0 0
    %734 = vmatprep.subr.bf16.mxu0 0
    %735 = vmatpush1.bf16.xpose.msra.mxu0 0
    %736 = vmatprep.subr.bf16.mxu0 0
    %737 = vmatpush1.bf16.xpose.msra.mxu0 0
    %738 = vmatprep.subr.bf16.mxu0 0
    %739 = vmatpush1.bf16.xpose.msra.mxu0 0
    %740 = vmatprep.subr.bf16.mxu0 0
    %741 = vmatpush1.bf16.xpose.msra.mxu0 0
    %742 = vmatprep.subr.bf16.mxu0 0
    %743 = vmatpush1.bf16.xpose.msra.mxu0 0
    %744 = vmatprep.subr.bf16.mxu0 0
    %745 = vmatpush1.bf16.xpose.msra.mxu0 0
    %746 = vmatprep.subr.bf16.mxu0 0
    %747 = vmatpush1.bf16.xpose.msra.mxu0 0
    %748 = vmatprep.subr.bf16.mxu0 0
    %749 = vmatpush1.bf16.xpose.msra.mxu0 0
    %750 = vmatprep.subr.bf16.mxu0 0
    %751 = vmatpush1.bf16.xpose.msra.mxu0 0
    %752 = vmatprep.mubr.bf16.mxu0 0
    %753 = vmatmul.mubr.bf16.gmra.mrb[0].mxu0 %v715
    %v754 = vpop.f32.mrb[0].mxu0
    %v755 = vadd.f32 0.0, %v754
    %v756 = vpop.f32.mrb[0].mxu0
    %v757 = vpop.f32.mrb[0].mxu0
    %v758 = vpop.f32.mrb[0].mxu0
    %759 = vdwg.mxu0
    %v760 = vsel %vm132, %v755, -inf
    %v761 = vsel %vm137, %v760, -inf
    %762 = vmax.xlane.f32.xlu0 %v761
    %v763 = vpop.xlane.xlu0 %762
    %v764 = vsub.f32 %v760, %v763
    %v765 = vmul.f32 %v764, 1.442695
    %v766 = vpow.pop %v765
    %v767 = vsel %vm137, %v766, 0.0
    %768 = vadd.xlane.f32.xlu0 %v767
    %v769 = vpop.xlane.xlu0 %768
    %v770 = vrcp.pop %v769
    %v771 = vmul.f32 %v766, %v770
    %v772 = vpack.c.bf16 %v771, %v771
    %773 = vrot.lane.b32.xlu0 %v598, 56
    %v774 = vpop.permute.xlu0 %773
    %v776 = vsel %vm137, %v772, 0
    %v779 = vsel %vm202, %v774, 0
    %781 = vmatprep.subr.bf16.mxu0 0
    %782 = vmatpush1.bf16.msra.mxu0 %v779
    %783 = vmatprep.subr.bf16.mxu0 0
    %784 = vmatpush1.bf16.msra.mxu0 0
    %785 = vmatprep.subr.bf16.mxu0 0
    %786 = vmatpush1.bf16.msra.mxu0 0
    %787 = vmatprep.subr.bf16.mxu0 0
    %788 = vmatpush1.bf16.msra.mxu0 0
    %789 = vmatprep.subr.bf16.mxu0 0
    %790 = vmatpush1.bf16.msra.mxu0 0
    %791 = vmatprep.subr.bf16.mxu0 0
    %792 = vmatpush1.bf16.msra.mxu0 0
    %793 = vmatprep.subr.bf16.mxu0 0
    %794 = vmatpush1.bf16.msra.mxu0 0
    %795 = vmatprep.subr.bf16.mxu0 0
    %796 = vmatpush1.bf16.msra.mxu0 0
    %797 = vmatprep.subr.bf16.mxu0 0
    %798 = vmatpush1.bf16.msra.mxu0 0
    %799 = vmatprep.subr.bf16.mxu0 0
    %800 = vmatpush1.bf16.msra.mxu0 0
    %801 = vmatprep.subr.bf16.mxu0 0
    %802 = vmatpush1.bf16.msra.mxu0 0
    %803 = vmatprep.subr.bf16.mxu0 0
    %804 = vmatpush1.bf16.msra.mxu0 0
    %805 = vmatprep.subr.bf16.mxu0 0
    %806 = vmatpush1.bf16.msra.mxu0 0
    %807 = vmatprep.subr.bf16.mxu0 0
    %808 = vmatpush1.bf16.msra.mxu0 0
    %809 = vmatprep.subr.bf16.mxu0 0
    %810 = vmatpush1.bf16.msra.mxu0 0
    %811 = vmatprep.subr.bf16.mxu0 0
    %812 = vmatpush1.bf16.msra.mxu0 0
    %813 = vmatprep.mubr.bf16.mxu0 0
    %814 = vmatmul.mubr.bf16.gmra.mrb[0].mxu0 %v776
    %v815 = vpop.f32.mrb[0].mxu0
    %v816 = vadd.f32 0.0, %v815
    %v817 = vpop.f32.mrb[0].mxu0
    %v818 = vpop.f32.mrb[0].mxu0
    %v819 = vpop.f32.mrb[0].mxu0
    %820 = vdwg.mxu0
    %822 = vrot.lane.b32.xlu0 %v816, 8
    %v823 = vpop.permute.xlu0 %822
    %825 = vst.msk [vmem:[#allocation2 + $0x8] sm:$0xff] %vm362, %v823
    %826 = vrot.lane.b32.xlu0 %v598, 112
    %v827 = vpop.permute.xlu0 %826
    %828 = vrot.lane.b32.xlu0 %v598, 80
    %v829 = vpop.permute.xlu0 %828
    %v831 = vsel %vm137, %v827, 0
    %v834 = vsel %vm137, %v829, 0
    %836 = vmatprep.subr.bf16.mxu0 0
    %837 = vmatpush1.bf16.xpose.msra.mxu0 %v834
    %838 = vmatprep.subr.bf16.mxu0 0
    %839 = vmatpush1.bf16.xpose.msra.mxu0 0
    %840 = vmatprep.subr.bf16.mxu0 0
    %841 = vmatpush1.bf16.xpose.msra.mxu0 0
    %842 = vmatprep.subr.bf16.mxu0 0
    %843 = vmatpush1.bf16.xpose.msra.mxu0 0
    %844 = vmatprep.subr.bf16.mxu0 0
    %845 = vmatpush1.bf16.xpose.msra.mxu0 0
    %846 = vmatprep.subr.bf16.mxu0 0
    %847 = vmatpush1.bf16.xpose.msra.mxu0 0
    %848 = vmatprep.subr.bf16.mxu0 0
    %849 = vmatpush1.bf16.xpose.msra.mxu0 0
    %850 = vmatprep.subr.bf16.mxu0 0
    %851 = vmatpush1.bf16.xpose.msra.mxu0 0
    %852 = vmatprep.subr.bf16.mxu0 0
    %853 = vmatpush1.bf16.xpose.msra.mxu0 0
    %854 = vmatprep.subr.bf16.mxu0 0
    %855 = vmatpush1.bf16.xpose.msra.mxu0 0
    %856 = vmatprep.subr.bf16.mxu0 0
    %857 = vmatpush1.bf16.xpose.msra.mxu0 0
    %858 = vmatprep.subr.bf16.mxu0 0
    %859 = vmatpush1.bf16.xpose.msra.mxu0 0
    %860 = vmatprep.subr.bf16.mxu0 0
    %861 = vmatpush1.bf16.xpose.msra.mxu0 0
    %862 = vmatprep.subr.bf16.mxu0 0
    %863 = vmatpush1.bf16.xpose.msra.mxu0 0
    %864 = vmatprep.subr.bf16.mxu0 0
    %865 = vmatpush1.bf16.xpose.msra.mxu0 0
    %866 = vmatprep.subr.bf16.mxu0 0
    %867 = vmatpush1.bf16.xpose.msra.mxu0 0
    %868 = vmatprep.mubr.bf16.mxu0 0
    %869 = vmatmul.mubr.bf16.gmra.mrb[0].mxu0 %v831
    %v870 = vpop.f32.mrb[0].mxu0
    %v871 = vadd.f32 0.0, %v870
    %v872 = vpop.f32.mrb[0].mxu0
    %v873 = vpop.f32.mrb[0].mxu0
    %v874 = vpop.f32.mrb[0].mxu0
    %875 = vdwg.mxu0
    %v876 = vsel %vm132, %v871, -inf
    %v877 = vsel %vm137, %v876, -inf
    %878 = vmax.xlane.f32.xlu0 %v877
    %v879 = vpop.xlane.xlu0 %878
    %v880 = vsub.f32 %v876, %v879
    %v881 = vmul.f32 %v880, 1.442695
    %v882 = vpow.pop %v881
    %v883 = vsel %vm137, %v882, 0.0
    %884 = vadd.xlane.f32.xlu0 %v883
    %v885 = vpop.xlane.xlu0 %884
    %v886 = vrcp.pop %v885
    %v887 = vmul.f32 %v882, %v886
    %v888 = vpack.c.bf16 %v887, %v887
    %889 = vrot.lane.b32.xlu0 %v598, 48
    %v890 = vpop.permute.xlu0 %889
    %v892 = vsel %vm137, %v888, 0
    %v895 = vsel %vm202, %v890, 0
    %897 = vmatprep.subr.bf16.mxu0 0
    %898 = vmatpush1.bf16.msra.mxu0 %v895
    %899 = vmatprep.subr.bf16.mxu0 0
    %900 = vmatpush1.bf16.msra.mxu0 0
    %901 = vmatprep.subr.bf16.mxu0 0
    %902 = vmatpush1.bf16.msra.mxu0 0
    %903 = vmatprep.subr.bf16.mxu0 0
    %904 = vmatpush1.bf16.msra.mxu0 0
    %905 = vmatprep.subr.bf16.mxu0 0
    %906 = vmatpush1.bf16.msra.mxu0 0
    %907 = vmatprep.subr.bf16.mxu0 0
    %908 = vmatpush1.bf16.msra.mxu0 0
    %909 = vmatprep.subr.bf16.mxu0 0
    %910 = vmatpush1.bf16.msra.mxu0 0
    %911 = vmatprep.subr.bf16.mxu0 0
    %912 = vmatpush1.bf16.msra.mxu0 0
    %913 = vmatprep.subr.bf16.mxu0 0
    %914 = vmatpush1.bf16.msra.mxu0 0
    %915 = vmatprep.subr.bf16.mxu0 0
    %916 = vmatpush1.bf16.msra.mxu0 0
    %917 = vmatprep.subr.bf16.mxu0 0
    %918 = vmatpush1.bf16.msra.mxu0 0
    %919 = vmatprep.subr.bf16.mxu0 0
    %920 = vmatpush1.bf16.msra.mxu0 0
    %921 = vmatprep.subr.bf16.mxu0 0
    %922 = vmatpush1.bf16.msra.mxu0 0
    %923 = vmatprep.subr.bf16.mxu0 0
    %924 = vmatpush1.bf16.msra.mxu0 0
    %925 = vmatprep.subr.bf16.mxu0 0
    %926 = vmatpush1.bf16.msra.mxu0 0
    %927 = vmatprep.subr.bf16.mxu0 0
    %928 = vmatpush1.bf16.msra.mxu0 0
    %929 = vmatprep.mubr.bf16.mxu0 0
    %930 = vmatmul.mubr.bf16.gmra.mrb[0].mxu0 %v892
    %v931 = vpop.f32.mrb[0].mxu0
    %v932 = vadd.f32 0.0, %v931
    %v933 = vpop.f32.mrb[0].mxu0
    %v934 = vpop.f32.mrb[0].mxu0
    %v935 = vpop.f32.mrb[0].mxu0
    %936 = vdwg.mxu0
    %938 = vrot.lane.b32.xlu0 %v932, 16
    %v939 = vpop.permute.xlu0 %938
    %941 = vst.msk [vmem:[#allocation2 + $0x8] sm:$0xff] %vm479, %v939
    %942 = vrot.lane.b32.xlu0 %v598, 104
    %v943 = vpop.permute.xlu0 %942
    %944 = vrot.lane.b32.xlu0 %v598, 72
    %v945 = vpop.permute.xlu0 %944
    %v947 = vsel %vm137, %v943, 0
    %v950 = vsel %vm137, %v945, 0
    %952 = vmatprep.subr.bf16.mxu0 0
    %953 = vmatpush1.bf16.xpose.msra.mxu0 %v950
    %954 = vmatprep.subr.bf16.mxu0 0
    %955 = vmatpush1.bf16.xpose.msra.mxu0 0
    %956 = vmatprep.subr.bf16.mxu0 0
    %957 = vmatpush1.bf16.xpose.msra.mxu0 0
    %958 = vmatprep.subr.bf16.mxu0 0
    %959 = vmatpush1.bf16.xpose.msra.mxu0 0
    %960 = vmatprep.subr.bf16.mxu0 0
    %961 = vmatpush1.bf16.xpose.msra.mxu0 0
    %962 = vmatprep.subr.bf16.mxu0 0
    %963 = vmatpush1.bf16.xpose.msra.mxu0 0
    %964 = vmatprep.subr.bf16.mxu0 0
    %965 = vmatpush1.bf16.xpose.msra.mxu0 0
    %966 = vmatprep.subr.bf16.mxu0 0
    %967 = vmatpush1.bf16.xpose.msra.mxu0 0
    %968 = vmatprep.subr.bf16.mxu0 0
    %969 = vmatpush1.bf16.xpose.msra.mxu0 0
    %970 = vmatprep.subr.bf16.mxu0 0
    %971 = vmatpush1.bf16.xpose.msra.mxu0 0
    %972 = vmatprep.subr.bf16.mxu0 0
    %973 = vmatpush1.bf16.xpose.msra.mxu0 0
    %974 = vmatprep.subr.bf16.mxu0 0
    %975 = vmatpush1.bf16.xpose.msra.mxu0 0
    %976 = vmatprep.subr.bf16.mxu0 0
    %977 = vmatpush1.bf16.xpose.msra.mxu0 0
    %978 = vmatprep.subr.bf16.mxu0 0
    %979 = vmatpush1.bf16.xpose.msra.mxu0 0
    %980 = vmatprep.subr.bf16.mxu0 0
    %981 = vmatpush1.bf16.xpose.msra.mxu0 0
    %982 = vmatprep.subr.bf16.mxu0 0
    %983 = vmatpush1.bf16.xpose.msra.mxu0 0
    %984 = vmatprep.mubr.bf16.mxu0 0
    %985 = vmatmul.mubr.bf16.gmra.mrb[0].mxu0 %v947
    %v986 = vpop.f32.mrb[0].mxu0
    %v987 = vadd.f32 0.0, %v986
    %v988 = vpop.f32.mrb[0].mxu0
    %v989 = vpop.f32.mrb[0].mxu0
    %v990 = vpop.f32.mrb[0].mxu0
    %991 = vdwg.mxu0
    %v992 = vsel %vm132, %v987, -inf
    %v993 = vsel %vm137, %v992, -inf
    %994 = vmax.xlane.f32.xlu0 %v993
    %v995 = vpop.xlane.xlu0 %994
    %v996 = vsub.f32 %v992, %v995
    %v997 = vmul.f32 %v996, 1.442695
    %v998 = vpow.pop %v997
    %v999 = vsel %vm137, %v998, 0.0
    %1000 = vadd.xlane.f32.xlu0 %v999
    %v1001 = vpop.xlane.xlu0 %1000
    %v1002 = vrcp.pop %v1001
    %v1003 = vmul.f32 %v998, %v1002
    %v1004 = vpack.c.bf16 %v1003, %v1003
    %1005 = vrot.lane.b32.xlu0 %v598, 40
    %v1006 = vpop.permute.xlu0 %1005
    %v1008 = vsel %vm137, %v1004, 0
    %v1011 = vsel %vm202, %v1006, 0
    %1013 = vmatprep.subr.bf16.mxu0 0
    %1014 = vmatpush1.bf16.msra.mxu0 %v1011
    %1015 = vmatprep.subr.bf16.mxu0 0
    %1016 = vmatpush1.bf16.msra.mxu0 0
    %1017 = vmatprep.subr.bf16.mxu0 0
    %1018 = vmatpush1.bf16.msra.mxu0 0
    %1019 = vmatprep.subr.bf16.mxu0 0
    %1020 = vmatpush1.bf16.msra.mxu0 0
    %1021 = vmatprep.subr.bf16.mxu0 0
    %1022 = vmatpush1.bf16.msra.mxu0 0
    %1023 = vmatprep.subr.bf16.mxu0 0
    %1024 = vmatpush1.bf16.msra.mxu0 0
    %1025 = vmatprep.subr.bf16.mxu0 0
    %1026 = vmatpush1.bf16.msra.mxu0 0
    %1027 = vmatprep.subr.bf16.mxu0 0
    %1028 = vmatpush1.bf16.msra.mxu0 0
    %1029 = vmatprep.subr.bf16.mxu0 0
    %1030 = vmatpush1.bf16.msra.mxu0 0
    %1031 = vmatprep.subr.bf16.mxu0 0
    %1032 = vmatpush1.bf16.msra.mxu0 0
    %1033 = vmatprep.subr.bf16.mxu0 0
    %1034 = vmatpush1.bf16.msra.mxu0 0
    %1035 = vmatprep.subr.bf16.mxu0 0
    %1036 = vmatpush1.bf16.msra.mxu0 0
    %1037 = vmatprep.subr.bf16.mxu0 0
    %1038 = vmatpush1.bf16.msra.mxu0 0
    %1039 = vmatprep.subr.bf16.mxu0 0
    %1040 = vmatpush1.bf16.msra.mxu0 0
    %1041 = vmatprep.subr.bf16.mxu0 0
    %1042 = vmatpush1.bf16.msra.mxu0 0
    %1043 = vmatprep.subr.bf16.mxu0 0
    %1044 = vmatpush1.bf16.msra.mxu0 0
    %1045 = vmatprep.mubr.bf16.mxu0 0
    %1046 = vmatmul.mubr.bf16.gmra.mrb[0].mxu0 %v1008
    %v1047 = vpop.f32.mrb[0].mxu0
    %v1048 = vadd.f32 0.0, %v1047
    %v1049 = vpop.f32.mrb[0].mxu0
    %v1050 = vpop.f32.mrb[0].mxu0
    %v1051 = vpop.f32.mrb[0].mxu0
    %1052 = vdwg.mxu0
    %1054 = vrot.lane.b32.xlu0 %v1048, 24
    %v1055 = vpop.permute.xlu0 %1054
    %1057 = vst.msk [vmem:[#allocation2 + $0x8] sm:$0xff] %vm596, %v1055
    %v1058 = vld [vmem:[#allocation2] sm:$0xff]
    %v1059 = vld [vmem:[#allocation2 + $0x8] sm:$0xff]
    %v1060 = vpack.c.bf16 %v1059, %v1058
    %v1061 = vld [vmem:[#allocation8] sm:$0xf]
    %v1062 = vld [vmem:[#allocation8 + $0x4] sm:$0xf]
    %v1063 = vld [vmem:[#allocation8 + $0x8] sm:$0xf]
    %v1064 = vld [vmem:[#allocation8 + $0xc] sm:$0xf]
    %v1065 = vld [vmem:[%s3] sm:$0x1]
    %v1067 = vlaneseq
    %v1068 = vshrl.u32 %v1067, 7
    %v1069 = vsub.s32 0, %v1068
    %v1070 = vrot.slane %v1065, %v1069
    %v1076 = vunpack.c.l.b16 %v1061
    %v1077 = vunpack.c.l.b16 %v1062
    %v1078 = vunpack.c.l.b16 %v1063
    %v1079 = vunpack.c.l.b16 %v1064
    %v1080 = vpack.c.b16 %v1077, %v1076
    %v1081 = vpack.c.b16 %v1079, %v1078
    %v1085 = vsel %vm83, %v1060, 0
    %1087 = vmatprep.subr.bf16.mxu0 0
    %1088 = vmatpush1.bf16.msra.mxu0 %v1080
    %1089 = vmatprep.subr.bf16.mxu0 0
    %1090 = vmatpush1.bf16.msra.mxu0 %v1081
    %1091 = vmatprep.subr.bf16.mxu0 0
    %1092 = vmatpush1.bf16.msra.mxu0 0
    %1093 = vmatprep.subr.bf16.mxu0 0
    %1094 = vmatpush1.bf16.msra.mxu0 0
    %1095 = vmatprep.subr.bf16.mxu0 0
    %1096 = vmatpush1.bf16.msra.mxu0 0
    %1097 = vmatprep.subr.bf16.mxu0 0
    %1098 = vmatpush1.bf16.msra.mxu0 0
    %1099 = vmatprep.subr.bf16.mxu0 0
    %1100 = vmatpush1.bf16.msra.mxu0 0
    %1101 = vmatprep.subr.bf16.mxu0 0
    %1102 = vmatpush1.bf16.msra.mxu0 0
    %1103 = vmatprep.subr.bf16.mxu0 0
    %1104 = vmatpush1.bf16.msra.mxu0 0
    %1105 = vmatprep.subr.bf16.mxu0 0
    %1106 = vmatpush1.bf16.msra.mxu0 0
    %1107 = vmatprep.subr.bf16.mxu0 0
    %1108 = vmatpush1.bf16.msra.mxu0 0
    %1109 = vmatprep.subr.bf16.mxu0 0
    %1110 = vmatpush1.bf16.msra.mxu0 0
    %1111 = vmatprep.subr.bf16.mxu0 0
    %1112 = vmatpush1.bf16.msra.mxu0 0
    %1113 = vmatprep.subr.bf16.mxu0 0
    %1114 = vmatpush1.bf16.msra.mxu0 0
    %1115 = vmatprep.subr.bf16.mxu0 0
    %1116 = vmatpush1.bf16.msra.mxu0 0
    %1117 = vmatprep.subr.bf16.mxu0 0
    %1118 = vmatpush1.bf16.msra.mxu0 0
    %1119 = vmatprep.mubr.bf16.mxu0 0
    %1120 = vmatmul.mubr.bf16.gmra.mrb[0].mxu0 %v1085
    %v1121 = vpop.f32.mrb[0].mxu0
    %v1122 = vadd.f32 %v1070, %v1121
    %v1123 = vpop.f32.mrb[0].mxu0
    %v1124 = vpop.f32.mrb[0].mxu0
    %v1125 = vadd.f32 %v1070, %v1124
    %v1126 = vpop.f32.mrb[0].mxu0
    %1127 = vdwg.mxu0
    %1128 = vst.msk [vmem:[#allocation9] sm:$0xff] %vm83, %v1122
    %1129 = vst.msk [vmem:[#allocation9 + $0x8] sm:$0xff] %vm83, %v1125
    // Predicated region
    $region30: #{tpu_custom_call.1} parent=1 // pred_check
      _
    $region31: #{tpu_custom_call.1} parent=1 // pred_check_branch
      %1131 = sbr.rel (0) target = $region33
    $region32: #{tpu_custom_call.1} parent=1 // pred_region
      %s1133 = ssub.s32 256, 256
      %1134 = vsyncadd [#allocation5], %s1133
      %s1135 = sshll.u32 [#allocation9], 4
      %s1136 = int_to_ptr.vmem [resolvable:$true] %s1135
      %1141 = dma.vmem_to_hbm [thread:$0]  %s1136, 256, %s4, [#allocation5], 128, 128, 8
    $region33: #{tpu_custom_call.1} parent=1 // pred_fallthru
      _
    // Predicated region
    $region34: #{tpu_custom_call.1} parent=1 // pred_check
      _
    $region35: #{tpu_custom_call.1} parent=1 // pred_check_branch
      %1143 = sbr.rel (0) target = $region37
    $region36: #{tpu_custom_call.1} parent=1 // pred_region
      %1144 = dma.done [#allocation5], 256
    $region37: #{tpu_custom_call.1} parent=1 // pred_fallthru
      _
    %1145 = vsyncpa [#allocation4], 1
    %1146 = vsyncpa [#allocation7], 1
    %1147 = vsyncpa [#allocation5], 1

</llo_original>
